<compile_context>
chip_gen: v6e
topology: v6e:2x2x1
jax: 0.10.0
libtpu: 0.0.40
codegen_flags: <defaults>
</compile_context>

<pallas_src>
import jax
import jax.numpy as jnp
from jax.experimental import pallas as pl
from jax.experimental.pallas import tpu as pltpu

# ---- small, (8,128)-aligned config implied by the module:
#      z_dim+emotion_dim -> n_embd -> GPT2 blocks -> music_dim ----
Z_DIM = 96
EMOTION_DIM = 32            # Z_DIM + EMOTION_DIM = 128 (lane-dense input)
IN_DIM = Z_DIM + EMOTION_DIM
N_EMBD = 128
N_INNER = 4 * N_EMBD        # 512
MUSIC_DIM = 128
N_LAYER = 2
BATCH = 4                   # padded to 8 sublanes inside the wrapper
LN_EPS = 1e-5
MXU_M = 256                 # fill MXU M dim on v6e/v7x (>=128 also fills v5e)

_N_BIAS_ROWS = 2 + 3 * N_LAYER                       # init, (attn, fc, mproj)*L, final
_BIAS_ROWS_PAD = ((_N_BIAS_ROWS + 7) // 8) * 8       # sublane-dense slab


def _gelu_new(x):
    # GPT2's tanh-approx GELU (f32 on the EUP/VPU).
    return 0.5 * x * (1.0 + jnp.tanh(jnp.sqrt(2.0 / jnp.pi) * (x + 0.044715 * x ** 3)))


def _normalize_fast(x, eps=LN_EPS):
    # Single-pass LayerNorm WITHOUT affine (gamma/beta folded into next matmul):
    # sum(x) and sum(x*x) in one reduce pass, var = E[x^2] - mu^2 (guarded).
    n = x.shape[-1]
    inv_n = 1.0 / n
    s = jnp.sum(x, axis=-1, keepdims=True)
    s2 = jnp.sum(x * x, axis=-1, keepdims=True)
    mu = s * inv_n
    var = jnp.maximum(s2 * inv_n - mu * mu, 0.0)
    return (x - mu) * jax.lax.rsqrt(var + eps)


def _normalize_ref(x, eps=LN_EPS):
    # Two-pass reference LayerNorm (matches PyTorch math most faithfully).
    mu = jnp.mean(x, axis=-1, keepdims=True)
    var = jnp.mean(jnp.square(x - mu), axis=-1, keepdims=True)
    return (x - mu) * jax.lax.rsqrt(var + eps)


def _layernorm_ref(x, g, b, eps=LN_EPS):
    return _normalize_ref(x, eps) * g + b


# ---------------------------------------------------------------------------
# Pallas kernel (one batch block per grid step; weights VMEM-resident)
# ---------------------------------------------------------------------------
def generator_kernel(zcat_ref, w_init_ref, w_attn_ref, w_fc_ref,
                     w_mproj_ref, w_fin_ref, bias_ref, out_ref):
    # Activations: (m_block, features); feature axis = lane axis.
    # Weights: bf16, stored (in_features, out_features) so the hot path is a
    # plain x @ W on the MXU with f32 accumulation.
    def bdot(x, w):
        return jnp.dot(x.astype(jnp.bfloat16), w,
                       preferred_element_type=jnp.float32)

    b = bias_ref[...]                                            # (8, 4E) f32, tiny

    x = zcat_ref[...]                                            # (m, Z+E) f32
    # initial_layer + wpe[0] (position embedding folded into the bias row).
    h = bdot(x, w_init_ref[...]) + b[0:1, :N_EMBD]

    for l in range(N_LAYER):
        # --- attention block (pre-LN, seq_len == 1) ---
        # LN affine folded into w_attn; V-proj and c_proj fused into a single
        # (n_embd x n_embd) matmul (softmax over one key == 1, exact).
        h_hat = _normalize_fast(h)
        h = h + bdot(h_hat, w_attn_ref[l]) + b[1 + 3 * l:2 + 3 * l, :N_EMBD]

        # --- MLP block (pre-LN) ---
        h_hat = _normalize_fast(h)
        ff = _gelu_new(bdot(h_hat, w_fc_ref[l])
                       + b[2 + 3 * l:3 + 3 * l, :N_INNER])
        h = h + bdot(ff, w_mproj_ref[l]) + b[3 + 3 * l:4 + 3 * l, :N_EMBD]

    # final LayerNorm (affine folded into w_fin) + final_layer Linear.
    h_hat = _normalize_fast(h)
    out = bdot(h_hat, w_fin_ref[...]) \
        + b[1 + 3 * N_LAYER:2 + 3 * N_LAYER, :MUSIC_DIM]
    out_ref[...] = out.astype(out_ref.dtype)


# ---------------------------------------------------------------------------
# Host-side parameter preparation (exact algebraic folding + bf16 cast)
# ---------------------------------------------------------------------------
def fold_params(p):
    """Fold LN affines, wpe[0], and the seq-len-1 V->c_proj chain into the
    adjacent matmuls, then pack biases into one slab.  Done once, in f32."""
    b_init = p['b_init'][0] + p['wpe0'][0]                       # (E,)

    w_attn, b_attn, w_fc, b_fc, w_mp, b_mp = [], [], [], [], [], []
    for l in range(N_LAYER):
        # V columns of c_attn only (Q/K are dead for seq_len == 1).
        wv = p['attn_w'][l][:, 2 * N_EMBD:]                      # (E, E)
        bv = p['attn_b'][l][0, 2 * N_EMBD:]                      # (E,)
        g1, b1 = p['ln1_g'][l][0], p['ln1_b'][l][0]
        wv_f = g1[:, None] * wv                                  # LN gamma fold
        bv_f = b1 @ wv + bv                                      # LN beta fold
        wp, bp = p['aproj_w'][l], p['aproj_b'][l][0]
        w_attn.append(wv_f @ wp)                                 # fuse V-proj + c_proj
        b_attn.append(bv_f @ wp + bp)

        g2, b2 = p['ln2_g'][l][0], p['ln2_b'][l][0]
        wfc, bfc = p['fc_w'][l], p['fc_b'][l][0]
        w_fc.append(g2[:, None] * wfc)
        b_fc.append(b2 @ wfc + bfc)
        w_mp.append(p['mproj_w'][l])
        b_mp.append(p['mproj_b'][l][0])

    gf, bf = p['lnf_g'][0], p['lnf_b'][0]
    w_fin = gf[:, None] * p['w_fin']
    b_fin = bf @ p['w_fin'] + p['b_fin'][0]

    # Pack all bias row-vectors into a single (8, N_INNER) f32 slab.
    slab = jnp.zeros((_BIAS_ROWS_PAD, N_INNER), jnp.float32)
    slab = slab.at[0, :N_EMBD].set(b_init)
    for l in range(N_LAYER):
        slab = slab.at[1 + 3 * l, :N_EMBD].set(b_attn[l])
        slab = slab.at[2 + 3 * l, :N_INNER].set(b_fc[l])
        slab = slab.at[3 + 3 * l, :N_EMBD].set(b_mp[l])
    slab = slab.at[1 + 3 * N_LAYER, :MUSIC_DIM].set(b_fin)

    wdt = jnp.bfloat16
    return dict(
        w_init=p['w_init'].astype(wdt),            # (Z+E, E)
        w_attn=jnp.stack(w_attn).astype(wdt),      # (L, E, E)
        w_fc=jnp.stack(w_fc).astype(wdt),          # (L, E, 4E)
        w_mproj=jnp.stack(w_mp).astype(wdt),       # (L, 4E, E)
        w_fin=w_fin.astype(wdt),                   # (E, MUSIC)
        bias=slab,                                 # (8, 4E) f32
    )


# ---------------------------------------------------------------------------
# Wrapper: 1-D grid over batch blocks, weights resident via constant index_maps
# ---------------------------------------------------------------------------
def conditional_generator_forward(z, emotional_state, kp):
    zcat = jnp.concatenate([z, emotional_state], axis=1)         # (B, Z+E)
    B = zcat.shape[0]
    B8 = ((B + 7) // 8) * 8                                      # f32 sublane packing
    m_block = min(MXU_M, B8)                                     # fill MXU M first
    B_pad = ((B8 + m_block - 1) // m_block) * m_block
    num_blocks = B_pad // m_block
    zcat_p = jnp.pad(zcat, ((0, B_pad - B), (0, 0)))

    args = (zcat_p, kp['w_init'], kp['w_attn'], kp['w_fc'],
            kp['w_mproj'], kp['w_fin'], kp['bias'])

    flops = 2 * B_pad * (IN_DIM * N_EMBD
                         + N_LAYER * (N_EMBD * N_EMBD + 2 * N_EMBD * N_INNER)
                         + N_EMBD * MUSIC_DIM)
    transcendentals = B_pad * (N_LAYER * N_INNER + 2 * N_LAYER + 1)
    bytes_accessed = (sum(int(a.size) * a.dtype.itemsize for a in args[1:])
                      + int(zcat_p.size) * 4 + B_pad * MUSIC_DIM * 4)

    grid_spec = pltpu.PrefetchScalarGridSpec(
        num_scalar_prefetch=0,
        grid=(num_blocks,),
        in_specs=[
            # streamed per grid step:
            pl.BlockSpec((m_block, IN_DIM), lambda i: (i, 0)),
            # VMEM-resident across grid steps (constant block index):
            pl.BlockSpec((IN_DIM, N_EMBD), lambda i: (0, 0)),
            pl.BlockSpec((N_LAYER, N_EMBD, N_EMBD), lambda i: (0, 0, 0)),
            pl.BlockSpec((N_LAYER, N_EMBD, N_INNER), lambda i: (0, 0, 0)),
            pl.BlockSpec((N_LAYER, N_INNER, N_EMBD), lambda i: (0, 0, 0)),
            pl.BlockSpec((N_EMBD, MUSIC_DIM), lambda i: (0, 0)),
            pl.BlockSpec((_BIAS_ROWS_PAD, N_INNER), lambda i: (0, 0)),
        ],
        out_specs=pl.BlockSpec((m_block, MUSIC_DIM), lambda i: (i, 0)),
    )

    out = pl.pallas_call(
        generator_kernel,
        out_shape=jax.ShapeDtypeStruct((B_pad, MUSIC_DIM), jnp.float32),
        grid_spec=grid_spec,
        compiler_params=pltpu.CompilerParams(
            dimension_semantics=("parallel",)),      # both TCs on v7x, no-op v5e/v6e
        cost_estimate=pl.CostEstimate(flops=flops,
                                      transcendentals=transcendentals,
                                      bytes_accessed=bytes_accessed),
    )(*args)
    return out[:B, :MUSIC_DIM]


# ---------------------------------------------------------------------------
# Parameter init in the original (PyTorch / GPT-2 Conv1D) layout
# ---------------------------------------------------------------------------
def init_params(key):
    ks = jax.random.split(key, 24)
    s = 0.02
    n = jax.random.normal
    p = {}
    p['w_init'] = s * n(ks[0], (IN_DIM, N_EMBD), jnp.float32)
    p['b_init'] = s * n(ks[1], (1, N_EMBD), jnp.float32)
    p['wpe0'] = s * n(ks[2], (1, N_EMBD), jnp.float32)
    # Non-trivial LN affines so the host-side folding is actually exercised.
    p['ln1_g'] = 1.0 + 0.1 * n(ks[3], (N_LAYER, 1, N_EMBD), jnp.float32)
    p['ln1_b'] = 0.1 * n(ks[4], (N_LAYER, 1, N_EMBD), jnp.float32)
    p['attn_w'] = s * n(ks[5], (N_LAYER, N_EMBD, 3 * N_EMBD), jnp.float32)   # c_attn
    p['attn_b'] = s * n(ks[6], (N_LAYER, 1, 3 * N_EMBD), jnp.float32)
    p['aproj_w'] = s * n(ks[7], (N_LAYER, N_EMBD, N_EMBD), jnp.float32)      # attn c_proj
    p['aproj_b'] = s * n(ks[8], (N_LAYER, 1, N_EMBD), jnp.float32)
    p['ln2_g'] = 1.0 + 0.1 * n(ks[9], (N_LAYER, 1, N_EMBD), jnp.float32)
    p['ln2_b'] = 0.1 * n(ks[10], (N_LAYER, 1, N_EMBD), jnp.float32)
    p['fc_w'] = s * n(ks[11], (N_LAYER, N_EMBD, N_INNER), jnp.float32)       # mlp c_fc
    p['fc_b'] = s * n(ks[12], (N_LAYER, 1, N_INNER), jnp.float32)
    p['mproj_w'] = s * n(ks[13], (N_LAYER, N_INNER, N_EMBD), jnp.float32)    # mlp c_proj
    p['mproj_b'] = s * n(ks[14], (N_LAYER, 1, N_EMBD), jnp.float32)
    p['lnf_g'] = 1.0 + 0.1 * n(ks[15], (1, N_EMBD), jnp.float32)
    p['lnf_b'] = 0.1 * n(ks[16], (1, N_EMBD), jnp.float32)
    p['w_fin'] = s * n(ks[17], (N_EMBD, MUSIC_DIM), jnp.float32)
    p['b_fin'] = s * n(ks[18], (1, MUSIC_DIM), jnp.float32)
    return p


# ---------------------------------------------------------------------------
# References
# ---------------------------------------------------------------------------
def reference_forward_original(z, emotional_state, p):
    """Original (unfolded, all-f32, two-pass LN) math = PyTorch module semantics."""
    x = jnp.concatenate([z, emotional_state], axis=1)
    h = x @ p['w_init'] + p['b_init'] + p['wpe0']
    for l in range(N_LAYER):
        hn = _layernorm_ref(h, p['ln1_g'][l], p['ln1_b'][l])
        qkv = hn @ p['attn_w'][l] + p['attn_b'][l]
        v = qkv[:, 2 * N_EMBD:]        # softmax over a single key == 1 exactly
        h = h + v @ p['aproj_w'][l] + p['aproj_b'][l]
        hn = _layernorm_ref(h, p['ln2_g'][l], p['ln2_b'][l])
        ff = _gelu_new(hn @ p['fc_w'][l] + p['fc_b'][l])
        h = h + ff @ p['mproj_w'][l] + p['mproj_b'][l]
    h = _layernorm_ref(h, p['lnf_g'], p['lnf_b'])
    return h @ p['w_fin'] + p['b_fin']


def reference_forward_folded(z, emotional_state, kp):
    """Mirror of the kernel math (folded params, bf16 matmul operands, fast LN)."""
    def bdot(x, w):
        return jnp.dot(x.astype(jnp.bfloat16), w, preferred_element_type=jnp.float32)
    b = kp['bias']
    x = jnp.concatenate([z, emotional_state], axis=1)
    h = bdot(x, kp['w_init']) + b[0:1, :N_EMBD]
    for l in range(N_LAYER):
        h = h + bdot(_normalize_fast(h), kp['w_attn'][l]) + b[1 + 3 * l:2 + 3 * l, :N_EMBD]
        ff = _gelu_new(bdot(_normalize_fast(h), kp['w_fc'][l]) + b[2 + 3 * l:3 + 3 * l, :N_INNER])
        h = h + bdot(ff, kp['w_mproj'][l]) + b[3 + 3 * l:4 + 3 * l, :N_EMBD]
    return bdot(_normalize_fast(h), kp['w_fin']) + b[1 + 3 * N_LAYER:2 + 3 * N_LAYER, :MUSIC_DIM]


if __name__ == "__main__":
    key = jax.random.PRNGKey(0)
    kz, ke, kp_key, kz2, ke2 = jax.random.split(key, 5)

    params = init_params(kp_key)
    kparams = fold_params(params)

    # --- small batch (single block, m_block == 8) ---
    z = jax.random.normal(kz, (BATCH, Z_DIM), jnp.float32)
    emotional_state = jax.random.normal(ke, (BATCH, EMOTION_DIM), jnp.float32)

    out = conditional_generator_forward(z, emotional_state, kparams)
    out = jax.block_until_ready(out)
    assert out.shape == (BATCH, MUSIC_DIM)

    # Tight check vs an exact mirror of the kernel math (same folded bf16 params).
    ref_folded = reference_forward_folded(z, emotional_state, kparams)
    err_folded = float(jnp.max(jnp.abs(out - ref_folded)))
    assert err_folded < 2e-3, f"mismatch vs folded reference: {err_folded}"

    # Looser check vs the original (unfolded, f32) module math — differences are
    # only from bf16 weight rounding / weight fusion / single-pass LN.
    ref_orig = reference_forward_original(z, emotional_state, params)
    err_orig = float(jnp.max(jnp.abs(out - ref_orig)))
    assert err_orig < 5e-2, f"mismatch vs original-semantics reference: {err_orig}"

    # --- larger batch: exercises the multi-step grid (m_block=256, 2 grid steps,
    #     weights VMEM-resident across steps, sample axis parallel on v7x) ---
    B2 = 300
    z2 = jax.random.normal(kz2, (B2, Z_DIM), jnp.float32)
    emo2 = jax.random.normal(ke2, (B2, EMOTION_DIM), jnp.float32)
    out2 = jax.block_until_ready(conditional_generator_forward(z2, emo2, kparams))
    assert out2.shape == (B2, MUSIC_DIM)
    ref2 = reference_forward_folded(z2, emo2, kparams)
    err2 = float(jnp.max(jnp.abs(out2 - ref2)))
    assert err2 < 2e-3, f"mismatch vs folded reference (batched grid path): {err2}"

    print("KERNEL_OK")
</pallas_src>

<mosaic_0001>
module attributes {stable_mosaic.version = 11 : i64} {
  func.func @generator_kernel(%arg0: i32, %arg1: memref<8x128xf32, #tpu.memory_space<vmem>>, %arg2: memref<128x128xbf16, #tpu.memory_space<vmem>>, %arg3: memref<2x128x128xbf16, #tpu.memory_space<vmem>>, %arg4: memref<2x128x512xbf16, #tpu.memory_space<vmem>>, %arg5: memref<2x512x128xbf16, #tpu.memory_space<vmem>>, %arg6: memref<128x128xbf16, #tpu.memory_space<vmem>>, %arg7: memref<8x512xf32, #tpu.memory_space<vmem>>, %arg8: memref<8x128xf32, #tpu.memory_space<vmem>>) attributes {dimension_semantics = [#tpu.dimension_semantics<parallel>], iteration_bounds = array<i64: 1>, scalar_prefetch = 0 : i64, scratch_operands = 0 : i64, tpu.core_type = #tpu.core_type<tc>, window_params = [{transform_indices = @transform_0, window_bounds = array<i64: 8, 128>}, {pipeline_mode = #tpu.pipeline_mode<synchronous>, transform_indices = @transform_1, window_bounds = array<i64: 128, 128>}, {pipeline_mode = #tpu.pipeline_mode<synchronous>, transform_indices = @transform_2, window_bounds = array<i64: 2, 128, 128>}, {pipeline_mode = #tpu.pipeline_mode<synchronous>, transform_indices = @transform_3, window_bounds = array<i64: 2, 128, 512>}, {pipeline_mode = #tpu.pipeline_mode<synchronous>, transform_indices = @transform_4, window_bounds = array<i64: 2, 512, 128>}, {pipeline_mode = #tpu.pipeline_mode<synchronous>, transform_indices = @transform_5, window_bounds = array<i64: 128, 128>}, {pipeline_mode = #tpu.pipeline_mode<synchronous>, transform_indices = @transform_6, window_bounds = array<i64: 8, 512>}, {transform_indices = @transform_7, window_bounds = array<i64: 8, 128>}]} {
    %c0 = arith.constant 0 : index
    %c0_0 = arith.constant 0 : index
    %0 = vector.load %arg7[%c0, %c0_0] : memref<8x512xf32, #tpu.memory_space<vmem>>, vector<8x512xf32>
    %c0_1 = arith.constant 0 : index
    %c0_2 = arith.constant 0 : index
    %1 = vector.load %arg1[%c0_1, %c0_2] : memref<8x128xf32, #tpu.memory_space<vmem>>, vector<8x128xf32>
    %c0_3 = arith.constant 0 : index
    %c0_4 = arith.constant 0 : index
    %2 = vector.load %arg2[%c0_3, %c0_4] : memref<128x128xbf16, #tpu.memory_space<vmem>>, vector<128x128xbf16>
    %3 = arith.truncf %1 : vector<8x128xf32> to vector<8x128xbf16>
    %cst = arith.constant dense<0.000000e+00> : vector<8x128xf32>
    %4 = tpu.matmul %3, %2, %cst {dimension_numbers = #tpu.dot_dimension_numbers<[1], [0], [0], [1], [0, 0, 1, 1], [], []>} : vector<8x128xbf16>, vector<128x128xbf16>, vector<8x128xf32> -> vector<8x128xf32>
    %5 = vector.extract_strided_slice %0 {offsets = [0, 0], sizes = [1, 128], strides = [1, 1]} : vector<8x512xf32> to vector<1x128xf32>
    %6 = vector.broadcast %5 : vector<1x128xf32> to vector<8x128xf32>
    %7 = arith.addf %4, %6 : vector<8x128xf32>
    %cst_5 = arith.constant dense<0.000000e+00> : vector<8xf32>
    %8 = vector.multi_reduction <add>, %7, %cst_5 [1] : vector<8x128xf32> to vector<8xf32>
    %9 = vector.shape_cast %8 : vector<8xf32> to vector<8x1xf32>
    %10 = arith.mulf %7, %7 : vector<8x128xf32>
    %cst_6 = arith.constant dense<0.000000e+00> : vector<8xf32>
    %11 = vector.multi_reduction <add>, %10, %cst_6 [1] : vector<8x128xf32> to vector<8xf32>
    %12 = vector.shape_cast %11 : vector<8xf32> to vector<8x1xf32>
    %cst_7 = arith.constant 7.812500e-03 : f32
    %13 = vector.broadcast %cst_7 : f32 to vector<8x1xf32>
    %14 = arith.mulf %9, %13 : vector<8x1xf32>
    %cst_8 = arith.constant 7.812500e-03 : f32
    %15 = vector.broadcast %cst_8 : f32 to vector<8x1xf32>
    %16 = arith.mulf %12, %15 : vector<8x1xf32>
    %17 = arith.mulf %14, %14 : vector<8x1xf32>
    %18 = arith.subf %16, %17 : vector<8x1xf32>
    %cst_9 = arith.constant 0.000000e+00 : f32
    %19 = vector.broadcast %cst_9 : f32 to vector<8x1xf32>
    %20 = arith.maximumf %18, %19 : vector<8x1xf32>
    %21 = vector.broadcast %14 : vector<8x1xf32> to vector<8x128xf32>
    %22 = arith.subf %7, %21 : vector<8x128xf32>
    %cst_10 = arith.constant 9.99999974E-6 : f32
    %23 = vector.broadcast %cst_10 : f32 to vector<8x1xf32>
    %24 = arith.addf %20, %23 : vector<8x1xf32>
    %25 = math.rsqrt %24 : vector<8x1xf32>
    %26 = vector.broadcast %25 : vector<8x1xf32> to vector<8x128xf32>
    %27 = arith.mulf %22, %26 : vector<8x128xf32>
    %c0_11 = arith.constant 0 : index
    %c0_12 = arith.constant 0 : index
    %c0_13 = arith.constant 0 : index
    %28 = vector.load %arg3[%c0_11, %c0_12, %c0_13] : memref<2x128x128xbf16, #tpu.memory_space<vmem>>, vector<1x128x128xbf16>
    %29 = vector.shape_cast %28 : vector<1x128x128xbf16> to vector<128x128xbf16>
    %30 = arith.truncf %27 : vector<8x128xf32> to vector<8x128xbf16>
    %cst_14 = arith.constant dense<0.000000e+00> : vector<8x128xf32>
    %31 = tpu.matmul %30, %29, %cst_14 {dimension_numbers = #tpu.dot_dimension_numbers<[1], [0], [0], [1], [0, 0, 1, 1], [], []>} : vector<8x128xbf16>, vector<128x128xbf16>, vector<8x128xf32> -> vector<8x128xf32>
    %32 = arith.addf %7, %31 : vector<8x128xf32>
    %33 = vector.extract_strided_slice %0 {offsets = [1, 0], sizes = [1, 128], strides = [1, 1]} : vector<8x512xf32> to vector<1x128xf32>
    %34 = vector.broadcast %33 : vector<1x128xf32> to vector<8x128xf32>
    %35 = arith.addf %32, %34 : vector<8x128xf32>
    %cst_15 = arith.constant dense<0.000000e+00> : vector<8xf32>
    %36 = vector.multi_reduction <add>, %35, %cst_15 [1] : vector<8x128xf32> to vector<8xf32>
    %37 = vector.shape_cast %36 : vector<8xf32> to vector<8x1xf32>
    %38 = arith.mulf %35, %35 : vector<8x128xf32>
    %cst_16 = arith.constant dense<0.000000e+00> : vector<8xf32>
    %39 = vector.multi_reduction <add>, %38, %cst_16 [1] : vector<8x128xf32> to vector<8xf32>
    %40 = vector.shape_cast %39 : vector<8xf32> to vector<8x1xf32>
    %cst_17 = arith.constant 7.812500e-03 : f32
    %41 = vector.broadcast %cst_17 : f32 to vector<8x1xf32>
    %42 = arith.mulf %37, %41 : vector<8x1xf32>
    %cst_18 = arith.constant 7.812500e-03 : f32
    %43 = vector.broadcast %cst_18 : f32 to vector<8x1xf32>
    %44 = arith.mulf %40, %43 : vector<8x1xf32>
    %45 = arith.mulf %42, %42 : vector<8x1xf32>
    %46 = arith.subf %44, %45 : vector<8x1xf32>
    %cst_19 = arith.constant 0.000000e+00 : f32
    %47 = vector.broadcast %cst_19 : f32 to vector<8x1xf32>
    %48 = arith.maximumf %46, %47 : vector<8x1xf32>
    %49 = vector.broadcast %42 : vector<8x1xf32> to vector<8x128xf32>
    %50 = arith.subf %35, %49 : vector<8x128xf32>
    %cst_20 = arith.constant 9.99999974E-6 : f32
    %51 = vector.broadcast %cst_20 : f32 to vector<8x1xf32>
    %52 = arith.addf %48, %51 : vector<8x1xf32>
    %53 = math.rsqrt %52 : vector<8x1xf32>
    %54 = vector.broadcast %53 : vector<8x1xf32> to vector<8x128xf32>
    %55 = arith.mulf %50, %54 : vector<8x128xf32>
    %c0_21 = arith.constant 0 : index
    %c0_22 = arith.constant 0 : index
    %c0_23 = arith.constant 0 : index
    %56 = vector.load %arg4[%c0_21, %c0_22, %c0_23] : memref<2x128x512xbf16, #tpu.memory_space<vmem>>, vector<1x128x512xbf16>
    %57 = vector.shape_cast %56 : vector<1x128x512xbf16> to vector<128x512xbf16>
    %58 = arith.truncf %55 : vector<8x128xf32> to vector<8x128xbf16>
    %cst_24 = arith.constant dense<0.000000e+00> : vector<8x512xf32>
    %59 = tpu.matmul %58, %57, %cst_24 {dimension_numbers = #tpu.dot_dimension_numbers<[1], [0], [0], [1], [0, 0, 1, 1], [], []>} : vector<8x128xbf16>, vector<128x512xbf16>, vector<8x512xf32> -> vector<8x512xf32>
    %60 = vector.extract_strided_slice %0 {offsets = [2, 0], sizes = [1, 512], strides = [1, 1]} : vector<8x512xf32> to vector<1x512xf32>
    %61 = vector.broadcast %60 : vector<1x512xf32> to vector<8x512xf32>
    %62 = arith.addf %59, %61 : vector<8x512xf32>
    %cst_25 = arith.constant 5.000000e-01 : f32
    %63 = vector.broadcast %cst_25 : f32 to vector<8x512xf32>
    %64 = arith.mulf %63, %62 : vector<8x512xf32>
    %cst_26 = arith.constant 0.636619746 : f32
    %65 = math.sqrt %cst_26 : f32
    %66 = arith.mulf %62, %62 : vector<8x512xf32>
    %67 = arith.mulf %62, %66 : vector<8x512xf32>
    %cst_27 = arith.constant 4.471500e-02 : f32
    %68 = vector.broadcast %cst_27 : f32 to vector<8x512xf32>
    %69 = arith.mulf %68, %67 : vector<8x512xf32>
    %70 = arith.addf %62, %69 : vector<8x512xf32>
    %71 = vector.broadcast %65 : f32 to vector<8x512xf32>
    %72 = arith.mulf %71, %70 : vector<8x512xf32>
    %73 = math.tanh %72 : vector<8x512xf32>
    %cst_28 = arith.constant 1.000000e+00 : f32
    %74 = vector.broadcast %cst_28 : f32 to vector<8x512xf32>
    %75 = arith.addf %74, %73 : vector<8x512xf32>
    %76 = arith.mulf %64, %75 : vector<8x512xf32>
    %c0_29 = arith.constant 0 : index
    %c0_30 = arith.constant 0 : index
    %c0_31 = arith.constant 0 : index
    %77 = vector.load %arg5[%c0_29, %c0_30, %c0_31] : memref<2x512x128xbf16, #tpu.memory_space<vmem>>, vector<1x512x128xbf16>
    %78 = vector.shape_cast %77 : vector<1x512x128xbf16> to vector<512x128xbf16>
    %79 = arith.truncf %76 : vector<8x512xf32> to vector<8x512xbf16>
    %cst_32 = arith.constant dense<0.000000e+00> : vector<8x128xf32>
    %80 = tpu.matmul %79, %78, %cst_32 {dimension_numbers = #tpu.dot_dimension_numbers<[1], [0], [0], [1], [0, 0, 1, 1], [], []>} : vector<8x512xbf16>, vector<512x128xbf16>, vector<8x128xf32> -> vector<8x128xf32>
    %81 = arith.addf %35, %80 : vector<8x128xf32>
    %82 = vector.extract_strided_slice %0 {offsets = [3, 0], sizes = [1, 128], strides = [1, 1]} : vector<8x512xf32> to vector<1x128xf32>
    %83 = vector.broadcast %82 : vector<1x128xf32> to vector<8x128xf32>
    %84 = arith.addf %81, %83 : vector<8x128xf32>
    %cst_33 = arith.constant dense<0.000000e+00> : vector<8xf32>
    %85 = vector.multi_reduction <add>, %84, %cst_33 [1] : vector<8x128xf32> to vector<8xf32>
    %86 = vector.shape_cast %85 : vector<8xf32> to vector<8x1xf32>
    %87 = arith.mulf %84, %84 : vector<8x128xf32>
    %cst_34 = arith.constant dense<0.000000e+00> : vector<8xf32>
    %88 = vector.multi_reduction <add>, %87, %cst_34 [1] : vector<8x128xf32> to vector<8xf32>
    %89 = vector.shape_cast %88 : vector<8xf32> to vector<8x1xf32>
    %cst_35 = arith.constant 7.812500e-03 : f32
    %90 = vector.broadcast %cst_35 : f32 to vector<8x1xf32>
    %91 = arith.mulf %86, %90 : vector<8x1xf32>
    %cst_36 = arith.constant 7.812500e-03 : f32
    %92 = vector.broadcast %cst_36 : f32 to vector<8x1xf32>
    %93 = arith.mulf %89, %92 : vector<8x1xf32>
    %94 = arith.mulf %91, %91 : vector<8x1xf32>
    %95 = arith.subf %93, %94 : vector<8x1xf32>
    %cst_37 = arith.constant 0.000000e+00 : f32
    %96 = vector.broadcast %cst_37 : f32 to vector<8x1xf32>
    %97 = arith.maximumf %95, %96 : vector<8x1xf32>
    %98 = vector.broadcast %91 : vector<8x1xf32> to vector<8x128xf32>
    %99 = arith.subf %84, %98 : vector<8x128xf32>
    %cst_38 = arith.constant 9.99999974E-6 : f32
    %100 = vector.broadcast %cst_38 : f32 to vector<8x1xf32>
    %101 = arith.addf %97, %100 : vector<8x1xf32>
    %102 = math.rsqrt %101 : vector<8x1xf32>
    %103 = vector.broadcast %102 : vector<8x1xf32> to vector<8x128xf32>
    %104 = arith.mulf %99, %103 : vector<8x128xf32>
    %c1 = arith.constant 1 : index
    %c0_39 = arith.constant 0 : index
    %c0_40 = arith.constant 0 : index
    %105 = vector.load %arg3[%c1, %c0_39, %c0_40] : memref<2x128x128xbf16, #tpu.memory_space<vmem>>, vector<1x128x128xbf16>
    %106 = vector.shape_cast %105 : vector<1x128x128xbf16> to vector<128x128xbf16>
    %107 = arith.truncf %104 : vector<8x128xf32> to vector<8x128xbf16>
    %cst_41 = arith.constant dense<0.000000e+00> : vector<8x128xf32>
    %108 = tpu.matmul %107, %106, %cst_41 {dimension_numbers = #tpu.dot_dimension_numbers<[1], [0], [0], [1], [0, 0, 1, 1], [], []>} : vector<8x128xbf16>, vector<128x128xbf16>, vector<8x128xf32> -> vector<8x128xf32>
    %109 = arith.addf %84, %108 : vector<8x128xf32>
    %110 = vector.extract_strided_slice %0 {offsets = [4, 0], sizes = [1, 128], strides = [1, 1]} : vector<8x512xf32> to vector<1x128xf32>
    %111 = vector.broadcast %110 : vector<1x128xf32> to vector<8x128xf32>
    %112 = arith.addf %109, %111 : vector<8x128xf32>
    %cst_42 = arith.constant dense<0.000000e+00> : vector<8xf32>
    %113 = vector.multi_reduction <add>, %112, %cst_42 [1] : vector<8x128xf32> to vector<8xf32>
    %114 = vector.shape_cast %113 : vector<8xf32> to vector<8x1xf32>
    %115 = arith.mulf %112, %112 : vector<8x128xf32>
    %cst_43 = arith.constant dense<0.000000e+00> : vector<8xf32>
    %116 = vector.multi_reduction <add>, %115, %cst_43 [1] : vector<8x128xf32> to vector<8xf32>
    %117 = vector.shape_cast %116 : vector<8xf32> to vector<8x1xf32>
    %cst_44 = arith.constant 7.812500e-03 : f32
    %118 = vector.broadcast %cst_44 : f32 to vector<8x1xf32>
    %119 = arith.mulf %114, %118 : vector<8x1xf32>
    %cst_45 = arith.constant 7.812500e-03 : f32
    %120 = vector.broadcast %cst_45 : f32 to vector<8x1xf32>
    %121 = arith.mulf %117, %120 : vector<8x1xf32>
    %122 = arith.mulf %119, %119 : vector<8x1xf32>
    %123 = arith.subf %121, %122 : vector<8x1xf32>
    %cst_46 = arith.constant 0.000000e+00 : f32
    %124 = vector.broadcast %cst_46 : f32 to vector<8x1xf32>
    %125 = arith.maximumf %123, %124 : vector<8x1xf32>
    %126 = vector.broadcast %119 : vector<8x1xf32> to vector<8x128xf32>
    %127 = arith.subf %112, %126 : vector<8x128xf32>
    %cst_47 = arith.constant 9.99999974E-6 : f32
    %128 = vector.broadcast %cst_47 : f32 to vector<8x1xf32>
    %129 = arith.addf %125, %128 : vector<8x1xf32>
    %130 = math.rsqrt %129 : vector<8x1xf32>
    %131 = vector.broadcast %130 : vector<8x1xf32> to vector<8x128xf32>
    %132 = arith.mulf %127, %131 : vector<8x128xf32>
    %c1_48 = arith.constant 1 : index
    %c0_49 = arith.constant 0 : index
    %c0_50 = arith.constant 0 : index
    %133 = vector.load %arg4[%c1_48, %c0_49, %c0_50] : memref<2x128x512xbf16, #tpu.memory_space<vmem>>, vector<1x128x512xbf16>
    %134 = vector.shape_cast %133 : vector<1x128x512xbf16> to vector<128x512xbf16>
    %135 = arith.truncf %132 : vector<8x128xf32> to vector<8x128xbf16>
    %cst_51 = arith.constant dense<0.000000e+00> : vector<8x512xf32>
    %136 = tpu.matmul %135, %134, %cst_51 {dimension_numbers = #tpu.dot_dimension_numbers<[1], [0], [0], [1], [0, 0, 1, 1], [], []>} : vector<8x128xbf16>, vector<128x512xbf16>, vector<8x512xf32> -> vector<8x512xf32>
    %137 = vector.extract_strided_slice %0 {offsets = [5, 0], sizes = [1, 512], strides = [1, 1]} : vector<8x512xf32> to vector<1x512xf32>
    %138 = vector.broadcast %137 : vector<1x512xf32> to vector<8x512xf32>
    %139 = arith.addf %136, %138 : vector<8x512xf32>
    %cst_52 = arith.constant 5.000000e-01 : f32
    %140 = vector.broadcast %cst_52 : f32 to vector<8x512xf32>
    %141 = arith.mulf %140, %139 : vector<8x512xf32>
    %cst_53 = arith.constant 0.636619746 : f32
    %142 = math.sqrt %cst_53 : f32
    %143 = arith.mulf %139, %139 : vector<8x512xf32>
    %144 = arith.mulf %139, %143 : vector<8x512xf32>
    %cst_54 = arith.constant 4.471500e-02 : f32
    %145 = vector.broadcast %cst_54 : f32 to vector<8x512xf32>
    %146 = arith.mulf %145, %144 : vector<8x512xf32>
    %147 = arith.addf %139, %146 : vector<8x512xf32>
    %148 = vector.broadcast %142 : f32 to vector<8x512xf32>
    %149 = arith.mulf %148, %147 : vector<8x512xf32>
    %150 = math.tanh %149 : vector<8x512xf32>
    %cst_55 = arith.constant 1.000000e+00 : f32
    %151 = vector.broadcast %cst_55 : f32 to vector<8x512xf32>
    %152 = arith.addf %151, %150 : vector<8x512xf32>
    %153 = arith.mulf %141, %152 : vector<8x512xf32>
    %c1_56 = arith.constant 1 : index
    %c0_57 = arith.constant 0 : index
    %c0_58 = arith.constant 0 : index
    %154 = vector.load %arg5[%c1_56, %c0_57, %c0_58] : memref<2x512x128xbf16, #tpu.memory_space<vmem>>, vector<1x512x128xbf16>
    %155 = vector.shape_cast %154 : vector<1x512x128xbf16> to vector<512x128xbf16>
    %156 = arith.truncf %153 : vector<8x512xf32> to vector<8x512xbf16>
    %cst_59 = arith.constant dense<0.000000e+00> : vector<8x128xf32>
    %157 = tpu.matmul %156, %155, %cst_59 {dimension_numbers = #tpu.dot_dimension_numbers<[1], [0], [0], [1], [0, 0, 1, 1], [], []>} : vector<8x512xbf16>, vector<512x128xbf16>, vector<8x128xf32> -> vector<8x128xf32>
    %158 = arith.addf %112, %157 : vector<8x128xf32>
    %159 = vector.extract_strided_slice %0 {offsets = [6, 0], sizes = [1, 128], strides = [1, 1]} : vector<8x512xf32> to vector<1x128xf32>
    %160 = vector.broadcast %159 : vector<1x128xf32> to vector<8x128xf32>
    %161 = arith.addf %158, %160 : vector<8x128xf32>
    %cst_60 = arith.constant dense<0.000000e+00> : vector<8xf32>
    %162 = vector.multi_reduction <add>, %161, %cst_60 [1] : vector<8x128xf32> to vector<8xf32>
    %163 = vector.shape_cast %162 : vector<8xf32> to vector<8x1xf32>
    %164 = arith.mulf %161, %161 : vector<8x128xf32>
    %cst_61 = arith.constant dense<0.000000e+00> : vector<8xf32>
    %165 = vector.multi_reduction <add>, %164, %cst_61 [1] : vector<8x128xf32> to vector<8xf32>
    %166 = vector.shape_cast %165 : vector<8xf32> to vector<8x1xf32>
    %cst_62 = arith.constant 7.812500e-03 : f32
    %167 = vector.broadcast %cst_62 : f32 to vector<8x1xf32>
    %168 = arith.mulf %163, %167 : vector<8x1xf32>
    %cst_63 = arith.constant 7.812500e-03 : f32
    %169 = vector.broadcast %cst_63 : f32 to vector<8x1xf32>
    %170 = arith.mulf %166, %169 : vector<8x1xf32>
    %171 = arith.mulf %168, %168 : vector<8x1xf32>
    %172 = arith.subf %170, %171 : vector<8x1xf32>
    %cst_64 = arith.constant 0.000000e+00 : f32
    %173 = vector.broadcast %cst_64 : f32 to vector<8x1xf32>
    %174 = arith.maximumf %172, %173 : vector<8x1xf32>
    %175 = vector.broadcast %168 : vector<8x1xf32> to vector<8x128xf32>
    %176 = arith.subf %161, %175 : vector<8x128xf32>
    %cst_65 = arith.constant 9.99999974E-6 : f32
    %177 = vector.broadcast %cst_65 : f32 to vector<8x1xf32>
    %178 = arith.addf %174, %177 : vector<8x1xf32>
    %179 = math.rsqrt %178 : vector<8x1xf32>
    %180 = vector.broadcast %179 : vector<8x1xf32> to vector<8x128xf32>
    %181 = arith.mulf %176, %180 : vector<8x128xf32>
    %c0_66 = arith.constant 0 : index
    %c0_67 = arith.constant 0 : index
    %182 = vector.load %arg6[%c0_66, %c0_67] : memref<128x128xbf16, #tpu.memory_space<vmem>>, vector<128x128xbf16>
    %183 = arith.truncf %181 : vector<8x128xf32> to vector<8x128xbf16>
    %cst_68 = arith.constant dense<0.000000e+00> : vector<8x128xf32>
    %184 = tpu.matmul %183, %182, %cst_68 {dimension_numbers = #tpu.dot_dimension_numbers<[1], [0], [0], [1], [0, 0, 1, 1], [], []>} : vector<8x128xbf16>, vector<128x128xbf16>, vector<8x128xf32> -> vector<8x128xf32>
    %185 = vector.extract_strided_slice %0 {offsets = [7, 0], sizes = [1, 128], strides = [1, 1]} : vector<8x512xf32> to vector<1x128xf32>
    %186 = vector.broadcast %185 : vector<1x128xf32> to vector<8x128xf32>
    %187 = arith.addf %184, %186 : vector<8x128xf32>
    %c0_69 = arith.constant 0 : index
    %c0_70 = arith.constant 0 : index
    %188 = vector.load %arg8[%c0_69, %c0_70] : memref<8x128xf32, #tpu.memory_space<vmem>>, vector<8x128xf32>
    tpu.vector_store %arg8[%c0_69, %c0_70], %187 {strides = array<i32>} : memref<8x128xf32, #tpu.memory_space<vmem>>, vector<8x128xf32>,
    return
  }
  func.func @transform_0(%arg0: i32) -> (i32, i32) {
    %c0_i32 = arith.constant 0 : i32
    %c0_i32_0 = arith.constant 0 : i32
    return %arg0, %c0_i32 : i32, i32
  }
  func.func @transform_1(%arg0: i32) -> (i32, i32) {
    %c0_i32 = arith.constant 0 : i32
    %c0_i32_0 = arith.constant 0 : i32
    %c0_i32_1 = arith.constant 0 : i32
    return %c0_i32, %c0_i32_0 : i32, i32
  }
  func.func @transform_2(%arg0: i32) -> (i32, i32, i32) {
    %c0_i32 = arith.constant 0 : i32
    %c0_i32_0 = arith.constant 0 : i32
    %c0_i32_1 = arith.constant 0 : i32
    %c0_i32_2 = arith.constant 0 : i32
    return %c0_i32, %c0_i32_0, %c0_i32_1 : i32, i32, i32
  }
  func.func @transform_3(%arg0: i32) -> (i32, i32, i32) {
    %c0_i32 = arith.constant 0 : i32
    %c0_i32_0 = arith.constant 0 : i32
    %c0_i32_1 = arith.constant 0 : i32
    %c0_i32_2 = arith.constant 0 : i32
    return %c0_i32, %c0_i32_0, %c0_i32_1 : i32, i32, i32
  }
  func.func @transform_4(%arg0: i32) -> (i32, i32, i32) {
    %c0_i32 = arith.constant 0 : i32
    %c0_i32_0 = arith.constant 0 : i32
    %c0_i32_1 = arith.constant 0 : i32
    %c0_i32_2 = arith.constant 0 : i32
    return %c0_i32, %c0_i32_0, %c0_i32_1 : i32, i32, i32
  }
  func.func @transform_5(%arg0: i32) -> (i32, i32) {
    %c0_i32 = arith.constant 0 : i32
    %c0_i32_0 = arith.constant 0 : i32
    %c0_i32_1 = arith.constant 0 : i32
    return %c0_i32, %c0_i32_0 : i32, i32
  }
  func.func @transform_6(%arg0: i32) -> (i32, i32) {
    %c0_i32 = arith.constant 0 : i32
    %c0_i32_0 = arith.constant 0 : i32
    %c0_i32_1 = arith.constant 0 : i32
    return %c0_i32, %c0_i32_0 : i32, i32
  }
  func.func @transform_7(%arg0: i32) -> (i32, i32) {
    %c0_i32 = arith.constant 0 : i32
    %c0_i32_0 = arith.constant 0 : i32
    return %arg0, %c0_i32 : i32, i32
  }
}

</mosaic_0001>

<llo_original>
// kernel: tpu_custom_call.1
$region0: #{tpu_custom_call.1}
  #allocation0 [shape = 'u32[]', space=smem, size = 0x4, offset = 0x4, fixed_abs, tag = 'smem constant byte address 0x4 - core index']
  #allocation1 [shape = 'u32[144,128]{1,0:T(1,128)}', space=vmem, size = 0x12000, scoped, tag = 'internal scratch']
  %s0 = inlined_call_operand.hbm [shape: f32[8,128], index: 0, kind: input, shape index: {}]
  %s1 = inlined_call_operand.hbm [shape: bf16[128,128], index: 1, kind: input, shape index: {}]
  %s2 = inlined_call_operand.hbm [shape: bf16[2,128,128], index: 2, kind: input, shape index: {}]
  %s3 = inlined_call_operand.hbm [shape: bf16[2,128,512], index: 3, kind: input, shape index: {}]
  %s4 = inlined_call_operand.hbm [shape: bf16[2,512,128], index: 4, kind: input, shape index: {}]
  %s5 = inlined_call_operand.hbm [shape: bf16[128,128], index: 5, kind: input, shape index: {}]
  %s6 = inlined_call_operand.hbm [shape: f32[8,512], index: 6, kind: input, shape index: {}]
  %s7 = inlined_call_operand.hbm [shape: f32[8,128], index: 7, kind: output, shape index: {}]
  %s8 = sld [smem:[#allocation0]]
  $region66: #{tpu_custom_call.1} parent=0
    _
  %s10 = ssub.s32 1, %s8
  %s11 = scalar_select 0, %s10, %s8
  $region1: #{tpu_custom_call.1} parent=0
    #allocation2 [shape = 'u8[4096]{0}', space=vmem, size = 0x1000, scoped, tag = 'input window, operand 0, single buffered']
    #allocation3 [shape = 's32[1]{0}', space=sflag, size = 0x4, scoped, tag = 'scoped memory for tpu_custom_call.1']
    #allocation4 [shape = 's32[1]{0}', space=sflag, size = 0x4, scoped, tag = 'scoped memory for tpu_custom_call.1']
    #allocation5 [shape = 'u8[32768]{0}', space=vmem, size = 0x8000, scoped, tag = 'input window, operand 1, single buffered']
    #allocation6 [shape = 's32[1]{0}', space=sflag, size = 0x4, scoped, tag = 'scoped memory for tpu_custom_call.1']
    #allocation7 [shape = 'u8[65536]{0}', space=vmem, size = 0x10000, scoped, tag = 'input window, operand 2, single buffered']
    #allocation8 [shape = 'u8[262144]{0}', space=vmem, size = 0x40000, scoped, tag = 'input window, operand 3, single buffered']
    #allocation9 [shape = 's32[1]{0}', space=sflag, size = 0x4, scoped, tag = 'scoped memory for tpu_custom_call.1']
    #allocation10 [shape = 'u8[262144]{0}', space=vmem, size = 0x40000, scoped, tag = 'input window, operand 4, single buffered']
    #allocation11 [shape = 'u8[32768]{0}', space=vmem, size = 0x8000, scoped, tag = 'input window, operand 5, single buffered']
    #allocation12 [shape = 's32[1]{0}', space=sflag, size = 0x4, scoped, tag = 'scoped memory for tpu_custom_call.1']
    #allocation13 [shape = 'u8[16384]{0}', space=vmem, size = 0x4000, scoped, tag = 'input window, operand 6, single buffered']
    #allocation14 [shape = 'u8[4096]{0}', space=vmem, size = 0x1000, scoped, tag = 'output window, operand 0, single buffered']
    %12 = vsyncpa [#allocation3], 0
    %13 = vsyncpa [#allocation6], 0
    %14 = vsyncpa [#allocation9], 0
    %15 = vsyncpa [#allocation12], 0
    %16 = vsyncpa [#allocation4], 0
    // Predicated region
    $region2: #{tpu_custom_call.1} parent=1 // pred_check
      _
    $region3: #{tpu_custom_call.1} parent=1 // pred_check_branch
      %18 = sbr.rel (0) target = $region5
    $region4: #{tpu_custom_call.1} parent=1 // pred_region
      %s20 = ssub.s32 128, 128
      %21 = vsyncadd [#allocation3], %s20
      %s23 = sshll.u32 [#allocation2], 4
      %s24 = int_to_ptr.vmem [resolvable:$true] %s23
      %26 = dma.hbm_to_vmem [thread:$0]  %s0, 128, %s24, [#allocation3]
    $region5: #{tpu_custom_call.1} parent=1 // pred_fallthru
      _
    // Predicated region
    $region6: #{tpu_custom_call.1} parent=1 // pred_check
      _
    $region7: #{tpu_custom_call.1} parent=1 // pred_check_branch
      %28 = sbr.rel (0) target = $region9
    $region8: #{tpu_custom_call.1} parent=1 // pred_region
      %s30 = ssub.s32 1024, 1024
      %31 = vsyncadd [#allocation6], %s30
      %s32 = sshll.u32 [#allocation5], 4
      %s33 = int_to_ptr.vmem [resolvable:$true] %s32
      %38 = dma.hbm_to_vmem [thread:$0]  %s1, 1024, %s33, [#allocation6], 64, 64, 4
    $region9: #{tpu_custom_call.1} parent=1 // pred_fallthru
      _
    // Predicated region
    $region10: #{tpu_custom_call.1} parent=1 // pred_check
      _
    $region11: #{tpu_custom_call.1} parent=1 // pred_check_branch
      %40 = sbr.rel (0) target = $region13
    $region12: #{tpu_custom_call.1} parent=1 // pred_region
      %s42 = ssub.s32 2048, 2048
      %43 = vsyncadd [#allocation6], %s42
      %s44 = sshll.u32 [#allocation7], 4
      %s45 = int_to_ptr.vmem [resolvable:$true] %s44
      %50 = dma.hbm_to_vmem [thread:$0]  %s2, 2048, %s45, [#allocation6], 64, 64, 4
    $region13: #{tpu_custom_call.1} parent=1 // pred_fallthru
      _
    // Predicated region
    $region14: #{tpu_custom_call.1} parent=1 // pred_check
      _
    $region15: #{tpu_custom_call.1} parent=1 // pred_check_branch
      %52 = sbr.rel (0) target = $region17
    $region16: #{tpu_custom_call.1} parent=1 // pred_region
      %s54 = ssub.s32 8192, 8192
      %55 = vsyncadd [#allocation9], %s54
      %s56 = sshll.u32 [#allocation8], 4
      %s57 = int_to_ptr.vmem [resolvable:$true] %s56
      %62 = dma.hbm_to_vmem [thread:$0]  %s3, 8192, %s57, [#allocation9], 256, 256, 16
    $region17: #{tpu_custom_call.1} parent=1 // pred_fallthru
      _
    // Predicated region
    $region18: #{tpu_custom_call.1} parent=1 // pred_check
      _
    $region19: #{tpu_custom_call.1} parent=1 // pred_check_branch
      %64 = sbr.rel (0) target = $region21
    $region20: #{tpu_custom_call.1} parent=1 // pred_region
      %s66 = ssub.s32 8192, 8192
      %67 = vsyncadd [#allocation9], %s66
      %s68 = sshll.u32 [#allocation10], 4
      %s69 = int_to_ptr.vmem [resolvable:$true] %s68
      %74 = dma.hbm_to_vmem [thread:$0]  %s4, 8192, %s69, [#allocation9], 64, 64, 4
    $region21: #{tpu_custom_call.1} parent=1 // pred_fallthru
      _
    // Predicated region
    $region22: #{tpu_custom_call.1} parent=1 // pred_check
      _
    $region23: #{tpu_custom_call.1} parent=1 // pred_check_branch
      %76 = sbr.rel (0) target = $region25
    $region24: #{tpu_custom_call.1} parent=1 // pred_region
      %s78 = ssub.s32 1024, 1024
      %79 = vsyncadd [#allocation12], %s78
      %s80 = sshll.u32 [#allocation11], 4
      %s81 = int_to_ptr.vmem [resolvable:$true] %s80
      %86 = dma.hbm_to_vmem [thread:$0]  %s5, 1024, %s81, [#allocation12], 64, 64, 4
    $region25: #{tpu_custom_call.1} parent=1 // pred_fallthru
      _
    // Predicated region
    $region26: #{tpu_custom_call.1} parent=1 // pred_check
      _
    $region27: #{tpu_custom_call.1} parent=1 // pred_check_branch
      %88 = sbr.rel (0) target = $region29
    $region28: #{tpu_custom_call.1} parent=1 // pred_region
      %s90 = ssub.s32 512, 512
      %91 = vsyncadd [#allocation12], %s90
      %s93 = sshll.u32 [#allocation13], 4
      %s94 = int_to_ptr.vmem [resolvable:$true] %s93
      %96 = dma.hbm_to_vmem [thread:$0]  %s6, 512, %s94, [#allocation12]
    $region29: #{tpu_custom_call.1} parent=1 // pred_fallthru
      _
    // Predicated region
    $region30: #{tpu_custom_call.1} parent=1 // pred_check
      _
    $region31: #{tpu_custom_call.1} parent=1 // pred_check_branch
      %98 = sbr.rel (0) target = $region33
    $region32: #{tpu_custom_call.1} parent=1 // pred_region
      %99 = dma.done [#allocation3], 128
    $region33: #{tpu_custom_call.1} parent=1 // pred_fallthru
      _
    // Predicated region
    $region34: #{tpu_custom_call.1} parent=1 // pred_check
      _
    $region35: #{tpu_custom_call.1} parent=1 // pred_check_branch
      %101 = sbr.rel (0) target = $region37
    $region36: #{tpu_custom_call.1} parent=1 // pred_region
      %102 = dma.done [#allocation6], 1024
    $region37: #{tpu_custom_call.1} parent=1 // pred_fallthru
      _
    // Predicated region
    $region38: #{tpu_custom_call.1} parent=1 // pred_check
      _
    $region39: #{tpu_custom_call.1} parent=1 // pred_check_branch
      %104 = sbr.rel (0) target = $region41
    $region40: #{tpu_custom_call.1} parent=1 // pred_region
      %105 = dma.done [#allocation6], 2048
    $region41: #{tpu_custom_call.1} parent=1 // pred_fallthru
      _
    // Predicated region
    $region42: #{tpu_custom_call.1} parent=1 // pred_check
      _
    $region43: #{tpu_custom_call.1} parent=1 // pred_check_branch
      %107 = sbr.rel (0) target = $region45
    $region44: #{tpu_custom_call.1} parent=1 // pred_region
      %108 = dma.done [#allocation9], 8192
    $region45: #{tpu_custom_call.1} parent=1 // pred_fallthru
      _
    // Predicated region
    $region46: #{tpu_custom_call.1} parent=1 // pred_check
      _
    $region47: #{tpu_custom_call.1} parent=1 // pred_check_branch
      %110 = sbr.rel (0) target = $region49
    $region48: #{tpu_custom_call.1} parent=1 // pred_region
      %111 = dma.done [#allocation9], 8192
    $region49: #{tpu_custom_call.1} parent=1 // pred_fallthru
      _
    // Predicated region
    $region50: #{tpu_custom_call.1} parent=1 // pred_check
      _
    $region51: #{tpu_custom_call.1} parent=1 // pred_check_branch
      %113 = sbr.rel (0) target = $region53
    $region52: #{tpu_custom_call.1} parent=1 // pred_region
      %114 = dma.done [#allocation12], 1024
    $region53: #{tpu_custom_call.1} parent=1 // pred_fallthru
      _
    // Predicated region
    $region54: #{tpu_custom_call.1} parent=1 // pred_check
      _
    $region55: #{tpu_custom_call.1} parent=1 // pred_check_branch
      %116 = sbr.rel (0) target = $region57
    $region56: #{tpu_custom_call.1} parent=1 // pred_region
      %117 = dma.done [#allocation12], 512
    $region57: #{tpu_custom_call.1} parent=1 // pred_fallthru
      _
    %v119 = vld [vmem:[#allocation13] sm:$0xff]
    %v120 = vld [vmem:[#allocation13 + $0x8] sm:$0xff]
    %v121 = vld [vmem:[#allocation13 + $0x10] sm:$0xff]
    %v122 = vld [vmem:[#allocation13 + $0x18] sm:$0xff]
    %v123 = vld [vmem:[#allocation2] sm:$0xff]
    %v124 = vld [vmem:[#allocation5] sm:$0xf]
    %v125 = vld [vmem:[#allocation5 + $0x4] sm:$0xf]
    %v126 = vld [vmem:[#allocation5 + $0x8] sm:$0xf]
    %v127 = vld [vmem:[#allocation5 + $0xc] sm:$0xf]
    %v128 = vld [vmem:[#allocation5 + $0x10] sm:$0xf]
    %v129 = vld [vmem:[#allocation5 + $0x14] sm:$0xf]
    %v130 = vld [vmem:[#allocation5 + $0x18] sm:$0xf]
    %v131 = vld [vmem:[#allocation5 + $0x1c] sm:$0xf]
    %v132 = vld [vmem:[#allocation5 + $0x20] sm:$0xf]
    %v133 = vld [vmem:[#allocation5 + $0x24] sm:$0xf]
    %v134 = vld [vmem:[#allocation5 + $0x28] sm:$0xf]
    %v135 = vld [vmem:[#allocation5 + $0x2c] sm:$0xf]
    %v136 = vld [vmem:[#allocation5 + $0x30] sm:$0xf]
    %v137 = vld [vmem:[#allocation5 + $0x34] sm:$0xf]
    %v138 = vld [vmem:[#allocation5 + $0x38] sm:$0xf]
    %v139 = vld [vmem:[#allocation5 + $0x3c] sm:$0xf]
    %v140 = vpack.c.bf16 %v123, %v123
    %v141 = vlaneseq
    %v142 = vshrl.u32 %v141, 7
    %v143 = vsub.s32 0, %v142
    %v144 = vrot.slane %v119, %v143
    %v161 = vunpack.c.l.b16 %v124
    %v162 = vunpack.c.l.b16 %v125
    %v163 = vunpack.c.l.b16 %v126
    %v164 = vunpack.c.l.b16 %v127
    %v165 = vunpack.c.l.b16 %v128
    %v166 = vunpack.c.l.b16 %v129
    %v167 = vunpack.c.l.b16 %v130
    %v168 = vunpack.c.l.b16 %v131
    %v169 = vunpack.c.l.b16 %v132
    %v170 = vunpack.c.l.b16 %v133
    %v171 = vunpack.c.l.b16 %v134
    %v172 = vunpack.c.l.b16 %v135
    %v173 = vunpack.c.l.b16 %v136
    %v174 = vunpack.c.l.b16 %v137
    %v175 = vunpack.c.l.b16 %v138
    %v176 = vunpack.c.l.b16 %v139
    %v177 = vpack.c.b16 %v162, %v161
    %v178 = vpack.c.b16 %v164, %v163
    %v179 = vpack.c.b16 %v166, %v165
    %v180 = vpack.c.b16 %v168, %v167
    %v181 = vpack.c.b16 %v170, %v169
    %v182 = vpack.c.b16 %v172, %v171
    %v183 = vpack.c.b16 %v174, %v173
    %v184 = vpack.c.b16 %v176, %v175
    %193 = vmatprep.subr.bf16.mxu0 0
    %194 = vmatpush1.bf16.msra.mxu0 %v184
    %195 = vmatprep.subr.bf16.mxu0 0
    %196 = vmatpush1.bf16.msra.mxu0 %v183
    %197 = vmatprep.subr.bf16.mxu0 0
    %198 = vmatpush1.bf16.msra.mxu0 %v182
    %199 = vmatprep.subr.bf16.mxu0 0
    %200 = vmatpush1.bf16.msra.mxu0 %v181
    %201 = vmatprep.subr.bf16.mxu0 0
    %202 = vmatpush1.bf16.msra.mxu0 %v180
    %203 = vmatprep.subr.bf16.mxu0 0
    %204 = vmatpush1.bf16.msra.mxu0 %v179
    %205 = vmatprep.subr.bf16.mxu0 0
    %206 = vmatpush1.bf16.msra.mxu0 %v178
    %207 = vmatprep.subr.bf16.mxu0 0
    %208 = vmatpush1.bf16.msra.mxu0 %v177
    %209 = vmatprep.subr.bf16.mxu0 0
    %210 = vmatpush2.bf16.msra.mxu0 0
    %211 = vmatprep.subr.bf16.mxu0 0
    %212 = vmatpush2.bf16.msra.mxu0 0
    %213 = vmatprep.subr.bf16.mxu0 0
    %214 = vmatpush2.bf16.msra.mxu0 0
    %215 = vmatprep.subr.bf16.mxu0 0
    %216 = vmatpush2.bf16.msra.mxu0 0
    %217 = vmatprep.subr.bf16.mxu0 0
    %218 = vmatpush2.bf16.msra.mxu0 0
    %219 = vmatprep.subr.bf16.mxu0 0
    %220 = vmatpush2.bf16.msra.mxu0 0
    %221 = vmatprep.subr.bf16.mxu0 0
    %222 = vmatpush2.bf16.msra.mxu0 0
    %223 = vmatprep.subr.bf16.mxu0 0
    %224 = vmatpush2.bf16.msra.mxu0 0
    %225 = vmatprep.mubr.bf16.mxu0 0
    %226 = vmatmul.mubr.bf16.gmra.mxu0 %v140
    %v227 = vpop.f32.mrf.mxu0
    %v228 = vadd.f32 %v144, %v227
    %v229 = vpop.f32.mrf.mxu0
    %v230 = vpop.f32.mrf.mxu0
    %v231 = vpop.f32.mrf.mxu0
    %232 = vdwg.mxu0
    %233 = vadd.xlane.f32.xlu0 %v228
    %v234 = vpop.xlane.xlu0 %233
    %v235 = vmul.f32 %v228, %v228
    %236 = vadd.xlane.f32.xlu0 %v235
    %v237 = vpop.xlane.xlu0 %236
    %v238 = vmul.f32 %v234, 0.0078125
    %v239 = vmul.f32 %v237, 0.0078125
    %v240 = vmul.f32 %v238, %v238
    %v241 = vsub.f32 %v239, %v240
    %v242 = vmax.f32 %v241, 0.0
    %v243 = vsub.f32 %v228, %v238
    %v244 = vadd.f32 %v242, 1e-05
    %v245 = vrsqrt.pop %v244
    %v246 = vmul.f32 %v243, %v245
    %v247 = vld [vmem:[#allocation7] sm:$0xf]
    %v248 = vld [vmem:[#allocation7 + $0x4] sm:$0xf]
    %v249 = vld [vmem:[#allocation7 + $0x8] sm:$0xf]
    %v250 = vld [vmem:[#allocation7 + $0xc] sm:$0xf]
    %v251 = vld [vmem:[#allocation7 + $0x10] sm:$0xf]
    %v252 = vld [vmem:[#allocation7 + $0x14] sm:$0xf]
    %v253 = vld [vmem:[#allocation7 + $0x18] sm:$0xf]
    %v254 = vld [vmem:[#allocation7 + $0x1c] sm:$0xf]
    %v255 = vld [vmem:[#allocation7 + $0x20] sm:$0xf]
    %v256 = vld [vmem:[#allocation7 + $0x24] sm:$0xf]
    %v257 = vld [vmem:[#allocation7 + $0x28] sm:$0xf]
    %v258 = vld [vmem:[#allocation7 + $0x2c] sm:$0xf]
    %v259 = vld [vmem:[#allocation7 + $0x30] sm:$0xf]
    %v260 = vld [vmem:[#allocation7 + $0x34] sm:$0xf]
    %v261 = vld [vmem:[#allocation7 + $0x38] sm:$0xf]
    %v262 = vld [vmem:[#allocation7 + $0x3c] sm:$0xf]
    %v263 = vpack.c.bf16 %v246, %v246
    %v280 = vunpack.c.l.b16 %v247
    %v281 = vunpack.c.l.b16 %v248
    %v282 = vunpack.c.l.b16 %v249
    %v283 = vunpack.c.l.b16 %v250
    %v284 = vunpack.c.l.b16 %v251
    %v285 = vunpack.c.l.b16 %v252
    %v286 = vunpack.c.l.b16 %v253
    %v287 = vunpack.c.l.b16 %v254
    %v288 = vunpack.c.l.b16 %v255
    %v289 = vunpack.c.l.b16 %v256
    %v290 = vunpack.c.l.b16 %v257
    %v291 = vunpack.c.l.b16 %v258
    %v292 = vunpack.c.l.b16 %v259
    %v293 = vunpack.c.l.b16 %v260
    %v294 = vunpack.c.l.b16 %v261
    %v295 = vunpack.c.l.b16 %v262
    %v296 = vpack.c.b16 %v281, %v280
    %v297 = vpack.c.b16 %v283, %v282
    %v298 = vpack.c.b16 %v285, %v284
    %v299 = vpack.c.b16 %v287, %v286
    %v300 = vpack.c.b16 %v289, %v288
    %v301 = vpack.c.b16 %v291, %v290
    %v302 = vpack.c.b16 %v293, %v292
    %v303 = vpack.c.b16 %v295, %v294
    %312 = vmatprep.subr.bf16.mxu0 0
    %313 = vmatpush1.bf16.msra.mxu0 %v303
    %314 = vmatprep.subr.bf16.mxu0 0
    %315 = vmatpush1.bf16.msra.mxu0 %v302
    %316 = vmatprep.subr.bf16.mxu0 0
    %317 = vmatpush1.bf16.msra.mxu0 %v301
    %318 = vmatprep.subr.bf16.mxu0 0
    %319 = vmatpush1.bf16.msra.mxu0 %v300
    %320 = vmatprep.subr.bf16.mxu0 0
    %321 = vmatpush1.bf16.msra.mxu0 %v299
    %322 = vmatprep.subr.bf16.mxu0 0
    %323 = vmatpush1.bf16.msra.mxu0 %v298
    %324 = vmatprep.subr.bf16.mxu0 0
    %325 = vmatpush1.bf16.msra.mxu0 %v297
    %326 = vmatprep.subr.bf16.mxu0 0
    %327 = vmatpush1.bf16.msra.mxu0 %v296
    %328 = vmatprep.subr.bf16.mxu0 0
    %329 = vmatpush2.bf16.msra.mxu0 0
    %330 = vmatprep.subr.bf16.mxu0 0
    %331 = vmatpush2.bf16.msra.mxu0 0
    %332 = vmatprep.subr.bf16.mxu0 0
    %333 = vmatpush2.bf16.msra.mxu0 0
    %334 = vmatprep.subr.bf16.mxu0 0
    %335 = vmatpush2.bf16.msra.mxu0 0
    %336 = vmatprep.subr.bf16.mxu0 0
    %337 = vmatpush2.bf16.msra.mxu0 0
    %338 = vmatprep.subr.bf16.mxu0 0
    %339 = vmatpush2.bf16.msra.mxu0 0
    %340 = vmatprep.subr.bf16.mxu0 0
    %341 = vmatpush2.bf16.msra.mxu0 0
    %342 = vmatprep.subr.bf16.mxu0 0
    %343 = vmatpush2.bf16.msra.mxu0 0
    %344 = vmatprep.mubr.bf16.mxu0 0
    %345 = vmatmul.mubr.bf16.gmra.mxu0 %v263
    %v346 = vpop.f32.mrf.mxu0
    %v347 = vadd.f32 0.0, %v346
    %v348 = vpop.f32.mrf.mxu0
    %v349 = vpop.f32.mrf.mxu0
    %v350 = vpop.f32.mrf.mxu0
    %351 = vdwg.mxu0
    %v352 = vadd.f32 %v228, %v347
    %v353 = vlaneseq
    %v354 = vshrl.u32 %v353, 7
    %v355 = vsub.s32 1, %v354
    %v356 = vrot.slane %v119, %v355
    %v357 = vadd.f32 %v352, %v356
    %358 = vadd.xlane.f32.xlu0 %v357
    %v359 = vpop.xlane.xlu0 %358
    %v360 = vmul.f32 %v357, %v357
    %361 = vadd.xlane.f32.xlu0 %v360
    %v362 = vpop.xlane.xlu0 %361
    %v363 = vmul.f32 %v359, 0.0078125
    %v364 = vmul.f32 %v362, 0.0078125
    %v365 = vmul.f32 %v363, %v363
    %v366 = vsub.f32 %v364, %v365
    %v367 = vmax.f32 %v366, 0.0
    %v368 = vsub.f32 %v357, %v363
    %v369 = vadd.f32 %v367, 1e-05
    %v370 = vrsqrt.pop %v369
    %v371 = vmul.f32 %v368, %v370
    %v372 = vld [vmem:[#allocation8] sm:$0xff]
    %v373 = vld [vmem:[#allocation8 + $0x8] sm:$0xff]
    %v374 = vld [vmem:[#allocation8 + $0x10] sm:$0xff]
    %v375 = vld [vmem:[#allocation8 + $0x18] sm:$0xff]
    %v376 = vld [vmem:[#allocation8 + $0x20] sm:$0xff]
    %v377 = vld [vmem:[#allocation8 + $0x28] sm:$0xff]
    %v378 = vld [vmem:[#allocation8 + $0x30] sm:$0xff]
    %v379 = vld [vmem:[#allocation8 + $0x38] sm:$0xff]
    %v380 = vld [vmem:[#allocation8 + $0x40] sm:$0xff]
    %v381 = vld [vmem:[#allocation8 + $0x48] sm:$0xff]
    %v382 = vld [vmem:[#allocation8 + $0x50] sm:$0xff]
    %v383 = vld [vmem:[#allocation8 + $0x58] sm:$0xff]
    %v384 = vld [vmem:[#allocation8 + $0x60] sm:$0xff]
    %v385 = vld [vmem:[#allocation8 + $0x68] sm:$0xff]
    %v386 = vld [vmem:[#allocation8 + $0x70] sm:$0xff]
    %v387 = vld [vmem:[#allocation8 + $0x78] sm:$0xff]
    %v388 = vld [vmem:[#allocation8 + $0x80] sm:$0xff]
    %v389 = vld [vmem:[#allocation8 + $0x88] sm:$0xff]
    %v390 = vld [vmem:[#allocation8 + $0x90] sm:$0xff]
    %v391 = vld [vmem:[#allocation8 + $0x98] sm:$0xff]
    %v392 = vld [vmem:[#allocation8 + $0xa0] sm:$0xff]
    %v393 = vld [vmem:[#allocation8 + $0xa8] sm:$0xff]
    %v394 = vld [vmem:[#allocation8 + $0xb0] sm:$0xff]
    %v395 = vld [vmem:[#allocation8 + $0xb8] sm:$0xff]
    %v396 = vld [vmem:[#allocation8 + $0xc0] sm:$0xff]
    %v397 = vld [vmem:[#allocation8 + $0xc8] sm:$0xff]
    %v398 = vld [vmem:[#allocation8 + $0xd0] sm:$0xff]
    %v399 = vld [vmem:[#allocation8 + $0xd8] sm:$0xff]
    %v400 = vld [vmem:[#allocation8 + $0xe0] sm:$0xff]
    %v401 = vld [vmem:[#allocation8 + $0xe8] sm:$0xff]
    %v402 = vld [vmem:[#allocation8 + $0xf0] sm:$0xff]
    %v403 = vld [vmem:[#allocation8 + $0xf8] sm:$0xff]
    %v404 = vpack.c.bf16 %v371, %v371
    %v405 = vlaneseq
    %v406 = vshrl.u32 %v405, 7
    %v407 = vsub.s32 2, %v406
    %v408 = vrot.slane %v119, %v407
    %v409 = vlaneseq
    %v410 = vshrl.u32 %v409, 7
    %v411 = vsub.s32 2, %v410
    %v412 = vrot.slane %v120, %v411
    %v413 = vlaneseq
    %v414 = vshrl.u32 %v413, 7
    %v415 = vsub.s32 2, %v414
    %v416 = vrot.slane %v121, %v415
    %v417 = vlaneseq
    %v418 = vshrl.u32 %v417, 7
    %v419 = vsub.s32 2, %v418
    %v420 = vrot.slane %v122, %v419
    %v453 = vunpack.c.l.b16 %v372
    %v454 = vunpack.c.h.b16 %v372
    %v455 = vunpack.c.l.b16 %v373
    %v456 = vunpack.c.h.b16 %v373
    %v457 = vunpack.c.l.b16 %v374
    %v458 = vunpack.c.h.b16 %v374
    %v459 = vunpack.c.l.b16 %v375
    %v460 = vunpack.c.h.b16 %v375
    %v461 = vunpack.c.l.b16 %v376
    %v462 = vunpack.c.h.b16 %v376
    %v463 = vunpack.c.l.b16 %v377
    %v464 = vunpack.c.h.b16 %v377
    %v465 = vunpack.c.l.b16 %v378
    %v466 = vunpack.c.h.b16 %v378
    %v467 = vunpack.c.l.b16 %v379
    %v468 = vunpack.c.h.b16 %v379
    %v469 = vunpack.c.l.b16 %v380
    %v470 = vunpack.c.h.b16 %v380
    %v471 = vunpack.c.l.b16 %v381
    %v472 = vunpack.c.h.b16 %v381
    %v473 = vunpack.c.l.b16 %v382
    %v474 = vunpack.c.h.b16 %v382
    %v475 = vunpack.c.l.b16 %v383
    %v476 = vunpack.c.h.b16 %v383
    %v477 = vunpack.c.l.b16 %v384
    %v478 = vunpack.c.h.b16 %v384
    %v479 = vunpack.c.l.b16 %v385
    %v480 = vunpack.c.h.b16 %v385
    %v481 = vunpack.c.l.b16 %v386
    %v482 = vunpack.c.h.b16 %v386
    %v483 = vunpack.c.l.b16 %v387
    %v484 = vunpack.c.h.b16 %v387
    %v485 = vunpack.c.l.b16 %v388
    %v486 = vunpack.c.h.b16 %v388
    %v487 = vunpack.c.l.b16 %v389
    %v488 = vunpack.c.h.b16 %v389
    %v489 = vunpack.c.l.b16 %v390
    %v490 = vunpack.c.h.b16 %v390
    %v491 = vunpack.c.l.b16 %v391
    %v492 = vunpack.c.h.b16 %v391
    %v493 = vunpack.c.l.b16 %v392
    %v494 = vunpack.c.h.b16 %v392
    %v495 = vunpack.c.l.b16 %v393
    %v496 = vunpack.c.h.b16 %v393
    %v497 = vunpack.c.l.b16 %v394
    %v498 = vunpack.c.h.b16 %v394
    %v499 = vunpack.c.l.b16 %v395
    %v500 = vunpack.c.h.b16 %v395
    %v501 = vunpack.c.l.b16 %v396
    %v502 = vunpack.c.h.b16 %v396
    %v503 = vunpack.c.l.b16 %v397
    %v504 = vunpack.c.h.b16 %v397
    %v505 = vunpack.c.l.b16 %v398
    %v506 = vunpack.c.h.b16 %v398
    %v507 = vunpack.c.l.b16 %v399
    %v508 = vunpack.c.h.b16 %v399
    %v509 = vunpack.c.l.b16 %v400
    %v510 = vunpack.c.h.b16 %v400
    %v511 = vunpack.c.l.b16 %v401
    %v512 = vunpack.c.h.b16 %v401
    %v513 = vunpack.c.l.b16 %v402
    %v514 = vunpack.c.h.b16 %v402
    %v515 = vunpack.c.l.b16 %v403
    %v516 = vunpack.c.h.b16 %v403
    %v517 = vpack.c.b16 %v457, %v453
    %v518 = vpack.c.b16 %v458, %v454
    %v519 = vpack.c.b16 %v459, %v455
    %v520 = vpack.c.b16 %v460, %v456
    %v521 = vpack.c.b16 %v465, %v461
    %v522 = vpack.c.b16 %v466, %v462
    %v523 = vpack.c.b16 %v467, %v463
    %v524 = vpack.c.b16 %v468, %v464
    %v525 = vpack.c.b16 %v473, %v469
    %v526 = vpack.c.b16 %v474, %v470
    %v527 = vpack.c.b16 %v475, %v471
    %v528 = vpack.c.b16 %v476, %v472
    %v529 = vpack.c.b16 %v481, %v477
    %v530 = vpack.c.b16 %v482, %v478
    %v531 = vpack.c.b16 %v483, %v479
    %v532 = vpack.c.b16 %v484, %v480
    %v533 = vpack.c.b16 %v489, %v485
    %v534 = vpack.c.b16 %v490, %v486
    %v535 = vpack.c.b16 %v491, %v487
    %v536 = vpack.c.b16 %v492, %v488
    %v537 = vpack.c.b16 %v497, %v493
    %v538 = vpack.c.b16 %v498, %v494
    %v539 = vpack.c.b16 %v499, %v495
    %v540 = vpack.c.b16 %v500, %v496
    %v541 = vpack.c.b16 %v505, %v501
    %v542 = vpack.c.b16 %v506, %v502
    %v543 = vpack.c.b16 %v507, %v503
    %v544 = vpack.c.b16 %v508, %v504
    %v545 = vpack.c.b16 %v513, %v509
    %v546 = vpack.c.b16 %v514, %v510
    %v547 = vpack.c.b16 %v515, %v511
    %v548 = vpack.c.b16 %v516, %v512
    %581 = vmatprep.subr.bf16.mxu0 %v546
    %582 = vmatpush1.bf16.msra.mxu0 %v545
    %583 = vmatprep.subr.bf16.mxu0 %v542
    %584 = vmatpush1.bf16.msra.mxu0 %v541
    %585 = vmatprep.subr.bf16.mxu0 %v538
    %586 = vmatpush1.bf16.msra.mxu0 %v537
    %587 = vmatprep.subr.bf16.mxu0 %v534
    %588 = vmatpush1.bf16.msra.mxu0 %v533
    %589 = vmatprep.subr.bf16.mxu0 %v530
    %590 = vmatpush1.bf16.msra.mxu0 %v529
    %591 = vmatprep.subr.bf16.mxu0 %v526
    %592 = vmatpush1.bf16.msra.mxu0 %v525
    %593 = vmatprep.subr.bf16.mxu0 %v522
    %594 = vmatpush1.bf16.msra.mxu0 %v521
    %595 = vmatprep.subr.bf16.mxu0 %v518
    %596 = vmatpush1.bf16.msra.mxu0 %v517
    %597 = vmatprep.subr.bf16.mxu0 0
    %598 = vmatpush2.bf16.msra.mxu0 0
    %599 = vmatprep.subr.bf16.mxu0 0
    %600 = vmatpush2.bf16.msra.mxu0 0
    %601 = vmatprep.subr.bf16.mxu0 0
    %602 = vmatpush2.bf16.msra.mxu0 0
    %603 = vmatprep.subr.bf16.mxu0 0
    %604 = vmatpush2.bf16.msra.mxu0 0
    %605 = vmatprep.subr.bf16.mxu0 0
    %606 = vmatpush2.bf16.msra.mxu0 0
    %607 = vmatprep.subr.bf16.mxu0 0
    %608 = vmatpush2.bf16.msra.mxu0 0
    %609 = vmatprep.subr.bf16.mxu0 0
    %610 = vmatpush2.bf16.msra.mxu0 0
    %611 = vmatprep.subr.bf16.mxu0 0
    %612 = vmatpush2.bf16.msra.mxu0 0
    %613 = vmatprep.mubr.bf16.mxu0 0
    %614 = vmatmul.mubr.bf16.gmra.mxu0 %v404
    %v615 = vpop.f32.mrf.mxu0
    %v616 = vadd.f32 %v408, %v615
    %v617 = vpop.f32.mrf.mxu0
    %v618 = vadd.f32 %v412, %v617
    %v619 = vpop.f32.mrf.mxu0
    %v620 = vpop.f32.mrf.mxu0
    %621 = vdwg.mxu0
    %622 = vmatprep.subr.bf16.mxu0 %v548
    %623 = vmatpush1.bf16.msra.mxu0 %v547
    %624 = vmatprep.subr.bf16.mxu0 %v544
    %625 = vmatpush1.bf16.msra.mxu0 %v543
    %626 = vmatprep.subr.bf16.mxu0 %v540
    %627 = vmatpush1.bf16.msra.mxu0 %v539
    %628 = vmatprep.subr.bf16.mxu0 %v536
    %629 = vmatpush1.bf16.msra.mxu0 %v535
    %630 = vmatprep.subr.bf16.mxu0 %v532
    %631 = vmatpush1.bf16.msra.mxu0 %v531
    %632 = vmatprep.subr.bf16.mxu0 %v528
    %633 = vmatpush1.bf16.msra.mxu0 %v527
    %634 = vmatprep.subr.bf16.mxu0 %v524
    %635 = vmatpush1.bf16.msra.mxu0 %v523
    %636 = vmatprep.subr.bf16.mxu0 %v520
    %637 = vmatpush1.bf16.msra.mxu0 %v519
    %638 = vmatprep.subr.bf16.mxu0 0
    %639 = vmatpush2.bf16.msra.mxu0 0
    %640 = vmatprep.subr.bf16.mxu0 0
    %641 = vmatpush2.bf16.msra.mxu0 0
    %642 = vmatprep.subr.bf16.mxu0 0
    %643 = vmatpush2.bf16.msra.mxu0 0
    %644 = vmatprep.subr.bf16.mxu0 0
    %645 = vmatpush2.bf16.msra.mxu0 0
    %646 = vmatprep.subr.bf16.mxu0 0
    %647 = vmatpush2.bf16.msra.mxu0 0
    %648 = vmatprep.subr.bf16.mxu0 0
    %649 = vmatpush2.bf16.msra.mxu0 0
    %650 = vmatprep.subr.bf16.mxu0 0
    %651 = vmatpush2.bf16.msra.mxu0 0
    %652 = vmatprep.subr.bf16.mxu0 0
    %653 = vmatpush2.bf16.msra.mxu0 0
    %654 = vmatprep.mubr.bf16.mxu0 0
    %655 = vmatmul.mubr.bf16.gmra.mxu0 %v404
    %v656 = vpop.f32.mrf.mxu0
    %v657 = vadd.f32 %v416, %v656
    %v658 = vpop.f32.mrf.mxu0
    %v659 = vadd.f32 %v420, %v658
    %v660 = vpop.f32.mrf.mxu0
    %v661 = vpop.f32.mrf.mxu0
    %662 = vdwg.mxu0
    %v663 = vmul.f32 %v616, 0.5
    %v664 = vmul.f32 %v618, 0.5
    %v665 = vmul.f32 %v657, 0.5
    %v666 = vmul.f32 %v659, 0.5
    %v667 = vmul.f32 %v616, %v616
    %v668 = vmul.f32 %v618, %v618
    %v669 = vmul.f32 %v657, %v657
    %v670 = vmul.f32 %v659, %v659
    %v671 = vmul.f32 %v616, %v667
    %v672 = vmul.f32 %v618, %v668
    %v673 = vmul.f32 %v657, %v669
    %v674 = vmul.f32 %v659, %v670
    %v675 = vmul.f32 %v671, 0.044715
    %v676 = vmul.f32 %v672, 0.044715
    %v677 = vmul.f32 %v673, 0.044715
    %v678 = vmul.f32 %v674, 0.044715
    %v679 = vadd.f32 %v616, %v675
    %v680 = vadd.f32 %v618, %v676
    %v681 = vadd.f32 %v657, %v677
    %v682 = vadd.f32 %v659, %v678
    %v683 = vmul.f32 %v679, 0.7978845
    %v684 = vmul.f32 %v680, 0.7978845
    %v685 = vmul.f32 %v681, 0.7978845
    %v686 = vmul.f32 %v682, 0.7978845
    %v687 = vtanh.pop %v683
    %v688 = vtanh.pop %v684
    %v689 = vtanh.pop %v685
    %v690 = vtanh.pop %v686
    %v691 = vadd.f32 %v687, 1.0
    %v692 = vadd.f32 %v688, 1.0
    %v693 = vadd.f32 %v689, 1.0
    %v694 = vadd.f32 %v690, 1.0
    %v695 = vmul.f32 %v663, %v691
    %v696 = vmul.f32 %v664, %v692
    %v697 = vmul.f32 %v665, %v693
    %v698 = vmul.f32 %v666, %v694
    %v699 = vld [vmem:[#allocation10] sm:$0xf]
    %v700 = vld [vmem:[#allocation10 + $0x4] sm:$0xf]
    %v701 = vld [vmem:[#allocation10 + $0x8] sm:$0xf]
    %v702 = vld [vmem:[#allocation10 + $0xc] sm:$0xf]
    %v703 = vld [vmem:[#allocation10 + $0x10] sm:$0xf]
    %v704 = vld [vmem:[#allocation10 + $0x14] sm:$0xf]
    %v705 = vld [vmem:[#allocation10 + $0x18] sm:$0xf]
    %v706 = vld [vmem:[#allocation10 + $0x1c] sm:$0xf]
    %v707 = vld [vmem:[#allocation10 + $0x20] sm:$0xf]
    %v708 = vld [vmem:[#allocation10 + $0x24] sm:$0xf]
    %v709 = vld [vmem:[#allocation10 + $0x28] sm:$0xf]
    %v710 = vld [vmem:[#allocation10 + $0x2c] sm:$0xf]
    %v711 = vld [vmem:[#allocation10 + $0x30] sm:$0xf]
    %v712 = vld [vmem:[#allocation10 + $0x34] sm:$0xf]
    %v713 = vld [vmem:[#allocation10 + $0x38] sm:$0xf]
    %v714 = vld [vmem:[#allocation10 + $0x3c] sm:$0xf]
    %v715 = vld [vmem:[#allocation10 + $0x40] sm:$0xf]
    %v716 = vld [vmem:[#allocation10 + $0x44] sm:$0xf]
    %v717 = vld [vmem:[#allocation10 + $0x48] sm:$0xf]
    %v718 = vld [vmem:[#allocation10 + $0x4c] sm:$0xf]
    %v719 = vld [vmem:[#allocation10 + $0x50] sm:$0xf]
    %v720 = vld [vmem:[#allocation10 + $0x54] sm:$0xf]
    %v721 = vld [vmem:[#allocation10 + $0x58] sm:$0xf]
    %v722 = vld [vmem:[#allocation10 + $0x5c] sm:$0xf]
    %v723 = vld [vmem:[#allocation10 + $0x60] sm:$0xf]
    %v724 = vld [vmem:[#allocation10 + $0x64] sm:$0xf]
    %v725 = vld [vmem:[#allocation10 + $0x68] sm:$0xf]
    %v726 = vld [vmem:[#allocation10 + $0x6c] sm:$0xf]
    %v727 = vld [vmem:[#allocation10 + $0x70] sm:$0xf]
    %v728 = vld [vmem:[#allocation10 + $0x74] sm:$0xf]
    %v729 = vld [vmem:[#allocation10 + $0x78] sm:$0xf]
    %v730 = vld [vmem:[#allocation10 + $0x7c] sm:$0xf]
    %v731 = vld [vmem:[#allocation10 + $0x80] sm:$0xf]
    %v732 = vld [vmem:[#allocation10 + $0x84] sm:$0xf]
    %v733 = vld [vmem:[#allocation10 + $0x88] sm:$0xf]
    %v734 = vld [vmem:[#allocation10 + $0x8c] sm:$0xf]
    %v735 = vld [vmem:[#allocation10 + $0x90] sm:$0xf]
    %v736 = vld [vmem:[#allocation10 + $0x94] sm:$0xf]
    %v737 = vld [vmem:[#allocation10 + $0x98] sm:$0xf]
    %v738 = vld [vmem:[#allocation10 + $0x9c] sm:$0xf]
    %v739 = vld [vmem:[#allocation10 + $0xa0] sm:$0xf]
    %v740 = vld [vmem:[#allocation10 + $0xa4] sm:$0xf]
    %v741 = vld [vmem:[#allocation10 + $0xa8] sm:$0xf]
    %v742 = vld [vmem:[#allocation10 + $0xac] sm:$0xf]
    %v743 = vld [vmem:[#allocation10 + $0xb0] sm:$0xf]
    %v744 = vld [vmem:[#allocation10 + $0xb4] sm:$0xf]
    %v745 = vld [vmem:[#allocation10 + $0xb8] sm:$0xf]
    %v746 = vld [vmem:[#allocation10 + $0xbc] sm:$0xf]
    %v747 = vld [vmem:[#allocation10 + $0xc0] sm:$0xf]
    %v748 = vld [vmem:[#allocation10 + $0xc4] sm:$0xf]
    %v749 = vld [vmem:[#allocation10 + $0xc8] sm:$0xf]
    %v750 = vld [vmem:[#allocation10 + $0xcc] sm:$0xf]
    %v751 = vld [vmem:[#allocation10 + $0xd0] sm:$0xf]
    %v752 = vld [vmem:[#allocation10 + $0xd4] sm:$0xf]
    %v753 = vld [vmem:[#allocation10 + $0xd8] sm:$0xf]
    %v754 = vld [vmem:[#allocation10 + $0xdc] sm:$0xf]
    %v755 = vld [vmem:[#allocation10 + $0xe0] sm:$0xf]
    %v756 = vld [vmem:[#allocation10 + $0xe4] sm:$0xf]
    %v757 = vld [vmem:[#allocation10 + $0xe8] sm:$0xf]
    %v758 = vld [vmem:[#allocation10 + $0xec] sm:$0xf]
    %v759 = vld [vmem:[#allocation10 + $0xf0] sm:$0xf]
    %v760 = vld [vmem:[#allocation10 + $0xf4] sm:$0xf]
    %v761 = vld [vmem:[#allocation10 + $0xf8] sm:$0xf]
    %v762 = vld [vmem:[#allocation10 + $0xfc] sm:$0xf]
    %v763 = vpack.c.bf16 %v695, %v695
    %v764 = vpack.c.bf16 %v696, %v696
    %v765 = vpack.c.bf16 %v697, %v697
    %v766 = vpack.c.bf16 %v698, %v698
    %v831 = vunpack.c.l.b16 %v699
    %v832 = vunpack.c.l.b16 %v700
    %v833 = vunpack.c.l.b16 %v701
    %v834 = vunpack.c.l.b16 %v702
    %v835 = vunpack.c.l.b16 %v703
    %v836 = vunpack.c.l.b16 %v704
    %v837 = vunpack.c.l.b16 %v705
    %v838 = vunpack.c.l.b16 %v706
    %v839 = vunpack.c.l.b16 %v707
    %v840 = vunpack.c.l.b16 %v708
    %v841 = vunpack.c.l.b16 %v709
    %v842 = vunpack.c.l.b16 %v710
    %v843 = vunpack.c.l.b16 %v711
    %v844 = vunpack.c.l.b16 %v712
    %v845 = vunpack.c.l.b16 %v713
    %v846 = vunpack.c.l.b16 %v714
    %v847 = vunpack.c.l.b16 %v715
    %v848 = vunpack.c.l.b16 %v716
    %v849 = vunpack.c.l.b16 %v717
    %v850 = vunpack.c.l.b16 %v718
    %v851 = vunpack.c.l.b16 %v719
    %v852 = vunpack.c.l.b16 %v720
    %v853 = vunpack.c.l.b16 %v721
    %v854 = vunpack.c.l.b16 %v722
    %v855 = vunpack.c.l.b16 %v723
    %v856 = vunpack.c.l.b16 %v724
    %v857 = vunpack.c.l.b16 %v725
    %v858 = vunpack.c.l.b16 %v726
    %v859 = vunpack.c.l.b16 %v727
    %v860 = vunpack.c.l.b16 %v728
    %v861 = vunpack.c.l.b16 %v729
    %v862 = vunpack.c.l.b16 %v730
    %v863 = vunpack.c.l.b16 %v731
    %v864 = vunpack.c.l.b16 %v732
    %v865 = vunpack.c.l.b16 %v733
    %v866 = vunpack.c.l.b16 %v734
    %v867 = vunpack.c.l.b16 %v735
    %v868 = vunpack.c.l.b16 %v736
    %v869 = vunpack.c.l.b16 %v737
    %v870 = vunpack.c.l.b16 %v738
    %v871 = vunpack.c.l.b16 %v739
    %v872 = vunpack.c.l.b16 %v740
    %v873 = vunpack.c.l.b16 %v741
    %v874 = vunpack.c.l.b16 %v742
    %v875 = vunpack.c.l.b16 %v743
    %v876 = vunpack.c.l.b16 %v744
    %v877 = vunpack.c.l.b16 %v745
    %v878 = vunpack.c.l.b16 %v746
    %v879 = vunpack.c.l.b16 %v747
    %v880 = vunpack.c.l.b16 %v748
    %v881 = vunpack.c.l.b16 %v749
    %v882 = vunpack.c.l.b16 %v750
    %v883 = vunpack.c.l.b16 %v751
    %v884 = vunpack.c.l.b16 %v752
    %v885 = vunpack.c.l.b16 %v753
    %v886 = vunpack.c.l.b16 %v754
    %v887 = vunpack.c.l.b16 %v755
    %v888 = vunpack.c.l.b16 %v756
    %v889 = vunpack.c.l.b16 %v757
    %v890 = vunpack.c.l.b16 %v758
    %v891 = vunpack.c.l.b16 %v759
    %v892 = vunpack.c.l.b16 %v760
    %v893 = vunpack.c.l.b16 %v761
    %v894 = vunpack.c.l.b16 %v762
    %v895 = vpack.c.b16 %v832, %v831
    %v896 = vpack.c.b16 %v834, %v833
    %v897 = vpack.c.b16 %v836, %v835
    %v898 = vpack.c.b16 %v838, %v837
    %v899 = vpack.c.b16 %v840, %v839
    %v900 = vpack.c.b16 %v842, %v841
    %v901 = vpack.c.b16 %v844, %v843
    %v902 = vpack.c.b16 %v846, %v845
    %v903 = vpack.c.b16 %v848, %v847
    %v904 = vpack.c.b16 %v850, %v849
    %v905 = vpack.c.b16 %v852, %v851
    %v906 = vpack.c.b16 %v854, %v853
    %v907 = vpack.c.b16 %v856, %v855
    %v908 = vpack.c.b16 %v858, %v857
    %v909 = vpack.c.b16 %v860, %v859
    %v910 = vpack.c.b16 %v862, %v861
    %v911 = vpack.c.b16 %v864, %v863
    %v912 = vpack.c.b16 %v866, %v865
    %v913 = vpack.c.b16 %v868, %v867
    %v914 = vpack.c.b16 %v870, %v869
    %v915 = vpack.c.b16 %v872, %v871
    %v916 = vpack.c.b16 %v874, %v873
    %v917 = vpack.c.b16 %v876, %v875
    %v918 = vpack.c.b16 %v878, %v877
    %v919 = vpack.c.b16 %v880, %v879
    %v920 = vpack.c.b16 %v882, %v881
    %v921 = vpack.c.b16 %v884, %v883
    %v922 = vpack.c.b16 %v886, %v885
    %v923 = vpack.c.b16 %v888, %v887
    %v924 = vpack.c.b16 %v890, %v889
    %v925 = vpack.c.b16 %v892, %v891
    %v926 = vpack.c.b16 %v894, %v893
    %959 = vmatprep.subr.bf16.mxu0 0
    %960 = vmatpush1.bf16.msra.mxu0 %v902
    %961 = vmatprep.subr.bf16.mxu0 0
    %962 = vmatpush1.bf16.msra.mxu0 %v901
    %963 = vmatprep.subr.bf16.mxu0 0
    %964 = vmatpush1.bf16.msra.mxu0 %v900
    %965 = vmatprep.subr.bf16.mxu0 0
    %966 = vmatpush1.bf16.msra.mxu0 %v899
    %967 = vmatprep.subr.bf16.mxu0 0
    %968 = vmatpush1.bf16.msra.mxu0 %v898
    %969 = vmatprep.subr.bf16.mxu0 0
    %970 = vmatpush1.bf16.msra.mxu0 %v897
    %971 = vmatprep.subr.bf16.mxu0 0
    %972 = vmatpush1.bf16.msra.mxu0 %v896
    %973 = vmatprep.subr.bf16.mxu0 0
    %974 = vmatpush1.bf16.msra.mxu0 %v895
    %975 = vmatprep.subr.bf16.mxu0 0
    %976 = vmatpush2.bf16.msra.mxu0 %v910
    %977 = vmatprep.subr.bf16.mxu0 0
    %978 = vmatpush2.bf16.msra.mxu0 %v909
    %979 = vmatprep.subr.bf16.mxu0 0
    %980 = vmatpush2.bf16.msra.mxu0 %v908
    %981 = vmatprep.subr.bf16.mxu0 0
    %982 = vmatpush2.bf16.msra.mxu0 %v907
    %983 = vmatprep.subr.bf16.mxu0 0
    %984 = vmatpush2.bf16.msra.mxu0 %v906
    %985 = vmatprep.subr.bf16.mxu0 0
    %986 = vmatpush2.bf16.msra.mxu0 %v905
    %987 = vmatprep.subr.bf16.mxu0 0
    %988 = vmatpush2.bf16.msra.mxu0 %v904
    %989 = vmatprep.subr.bf16.mxu0 0
    %990 = vmatpush2.bf16.msra.mxu0 %v903
    %991 = vmatprep.mubr.bf16.mxu0 %v764
    %992 = vmatmul.mubr.bf16.gmra.mxu0 %v763
    %v993 = vpop.f32.mrf.mxu0
    %v994 = vadd.f32 0.0, %v993
    %v995 = vpop.f32.mrf.mxu0
    %v996 = vpop.f32.mrf.mxu0
    %v997 = vpop.f32.mrf.mxu0
    %998 = vdwg.mxu0
    %999 = vmatprep.subr.bf16.mxu0 0
    %1000 = vmatpush1.bf16.msra.mxu0 %v918
    %1001 = vmatprep.subr.bf16.mxu0 0
    %1002 = vmatpush1.bf16.msra.mxu0 %v917
    %1003 = vmatprep.subr.bf16.mxu0 0
    %1004 = vmatpush1.bf16.msra.mxu0 %v916
    %1005 = vmatprep.subr.bf16.mxu0 0
    %1006 = vmatpush1.bf16.msra.mxu0 %v915
    %1007 = vmatprep.subr.bf16.mxu0 0
    %1008 = vmatpush1.bf16.msra.mxu0 %v914
    %1009 = vmatprep.subr.bf16.mxu0 0
    %1010 = vmatpush1.bf16.msra.mxu0 %v913
    %1011 = vmatprep.subr.bf16.mxu0 0
    %1012 = vmatpush1.bf16.msra.mxu0 %v912
    %1013 = vmatprep.subr.bf16.mxu0 0
    %1014 = vmatpush1.bf16.msra.mxu0 %v911
    %1015 = vmatprep.subr.bf16.mxu0 0
    %1016 = vmatpush2.bf16.msra.mxu0 %v926
    %1017 = vmatprep.subr.bf16.mxu0 0
    %1018 = vmatpush2.bf16.msra.mxu0 %v925
    %1019 = vmatprep.subr.bf16.mxu0 0
    %1020 = vmatpush2.bf16.msra.mxu0 %v924
    %1021 = vmatprep.subr.bf16.mxu0 0
    %1022 = vmatpush2.bf16.msra.mxu0 %v923
    %1023 = vmatprep.subr.bf16.mxu0 0
    %1024 = vmatpush2.bf16.msra.mxu0 %v922
    %1025 = vmatprep.subr.bf16.mxu0 0
    %1026 = vmatpush2.bf16.msra.mxu0 %v921
    %1027 = vmatprep.subr.bf16.mxu0 0
    %1028 = vmatpush2.bf16.msra.mxu0 %v920
    %1029 = vmatprep.subr.bf16.mxu0 0
    %1030 = vmatpush2.bf16.msra.mxu0 %v919
    %1031 = vmatprep.mubr.bf16.mxu0 %v766
    %1032 = vmatmul.mubr.bf16.gmra.mxu0 %v765
    %v1033 = vpop.f32.mrf.mxu0
    %v1034 = vadd.f32 %v994, %v1033
    %v1035 = vpop.f32.mrf.mxu0
    %v1036 = vpop.f32.mrf.mxu0
    %v1037 = vpop.f32.mrf.mxu0
    %1038 = vdwg.mxu0
    %v1039 = vadd.f32 %v357, %v1034
    %v1040 = vlaneseq
    %v1041 = vshrl.u32 %v1040, 7
    %v1042 = vsub.s32 3, %v1041
    %v1043 = vrot.slane %v119, %v1042
    %v1044 = vadd.f32 %v1039, %v1043
    %1045 = vadd.xlane.f32.xlu0 %v1044
    %v1046 = vpop.xlane.xlu0 %1045
    %v1047 = vmul.f32 %v1044, %v1044
    %1048 = vadd.xlane.f32.xlu0 %v1047
    %v1049 = vpop.xlane.xlu0 %1048
    %v1050 = vmul.f32 %v1046, 0.0078125
    %v1051 = vmul.f32 %v1049, 0.0078125
    %v1052 = vmul.f32 %v1050, %v1050
    %v1053 = vsub.f32 %v1051, %v1052
    %v1054 = vmax.f32 %v1053, 0.0
    %v1055 = vsub.f32 %v1044, %v1050
    %v1056 = vadd.f32 %v1054, 1e-05
    %v1057 = vrsqrt.pop %v1056
    %v1058 = vmul.f32 %v1055, %v1057
    %s1059 = scalar_lea.vmem [#allocation7], 64
    %v1060 = vld [vmem:[%s1059] sm:$0xf]
    %v1061 = vld [vmem:[%s1059 + $0x4] sm:$0xf]
    %v1062 = vld [vmem:[%s1059 + $0x8] sm:$0xf]
    %v1063 = vld [vmem:[%s1059 + $0xc] sm:$0xf]
    %v1064 = vld [vmem:[%s1059 + $0x10] sm:$0xf]
    %v1065 = vld [vmem:[%s1059 + $0x14] sm:$0xf]
    %v1066 = vld [vmem:[%s1059 + $0x18] sm:$0xf]
    %v1067 = vld [vmem:[%s1059 + $0x1c] sm:$0xf]
    %v1068 = vld [vmem:[%s1059 + $0x20] sm:$0xf]
    %v1069 = vld [vmem:[%s1059 + $0x24] sm:$0xf]
    %v1070 = vld [vmem:[%s1059 + $0x28] sm:$0xf]
    %v1071 = vld [vmem:[%s1059 + $0x2c] sm:$0xf]
    %v1072 = vld [vmem:[%s1059 + $0x30] sm:$0xf]
    %v1073 = vld [vmem:[%s1059 + $0x34] sm:$0xf]
    %v1074 = vld [vmem:[%s1059 + $0x38] sm:$0xf]
    %v1075 = vld [vmem:[%s1059 + $0x3c] sm:$0xf]
    %v1076 = vpack.c.bf16 %v1058, %v1058
    %v1093 = vunpack.c.l.b16 %v1060
    %v1094 = vunpack.c.l.b16 %v1061
    %v1095 = vunpack.c.l.b16 %v1062
    %v1096 = vunpack.c.l.b16 %v1063
    %v1097 = vunpack.c.l.b16 %v1064
    %v1098 = vunpack.c.l.b16 %v1065
    %v1099 = vunpack.c.l.b16 %v1066
    %v1100 = vunpack.c.l.b16 %v1067
    %v1101 = vunpack.c.l.b16 %v1068
    %v1102 = vunpack.c.l.b16 %v1069
    %v1103 = vunpack.c.l.b16 %v1070
    %v1104 = vunpack.c.l.b16 %v1071
    %v1105 = vunpack.c.l.b16 %v1072
    %v1106 = vunpack.c.l.b16 %v1073
    %v1107 = vunpack.c.l.b16 %v1074
    %v1108 = vunpack.c.l.b16 %v1075
    %v1109 = vpack.c.b16 %v1094, %v1093
    %v1110 = vpack.c.b16 %v1096, %v1095
    %v1111 = vpack.c.b16 %v1098, %v1097
    %v1112 = vpack.c.b16 %v1100, %v1099
    %v1113 = vpack.c.b16 %v1102, %v1101
    %v1114 = vpack.c.b16 %v1104, %v1103
    %v1115 = vpack.c.b16 %v1106, %v1105
    %v1116 = vpack.c.b16 %v1108, %v1107
    %1125 = vmatprep.subr.bf16.mxu0 0
    %1126 = vmatpush1.bf16.msra.mxu0 %v1116
    %1127 = vmatprep.subr.bf16.mxu0 0
    %1128 = vmatpush1.bf16.msra.mxu0 %v1115
    %1129 = vmatprep.subr.bf16.mxu0 0
    %1130 = vmatpush1.bf16.msra.mxu0 %v1114
    %1131 = vmatprep.subr.bf16.mxu0 0
    %1132 = vmatpush1.bf16.msra.mxu0 %v1113
    %1133 = vmatprep.subr.bf16.mxu0 0
    %1134 = vmatpush1.bf16.msra.mxu0 %v1112
    %1135 = vmatprep.subr.bf16.mxu0 0
    %1136 = vmatpush1.bf16.msra.mxu0 %v1111
    %1137 = vmatprep.subr.bf16.mxu0 0
    %1138 = vmatpush1.bf16.msra.mxu0 %v1110
    %1139 = vmatprep.subr.bf16.mxu0 0
    %1140 = vmatpush1.bf16.msra.mxu0 %v1109
    %1141 = vmatprep.subr.bf16.mxu0 0
    %1142 = vmatpush2.bf16.msra.mxu0 0
    %1143 = vmatprep.subr.bf16.mxu0 0
    %1144 = vmatpush2.bf16.msra.mxu0 0
    %1145 = vmatprep.subr.bf16.mxu0 0
    %1146 = vmatpush2.bf16.msra.mxu0 0
    %1147 = vmatprep.subr.bf16.mxu0 0
    %1148 = vmatpush2.bf16.msra.mxu0 0
    %1149 = vmatprep.subr.bf16.mxu0 0
    %1150 = vmatpush2.bf16.msra.mxu0 0
    %1151 = vmatprep.subr.bf16.mxu0 0
    %1152 = vmatpush2.bf16.msra.mxu0 0
    %1153 = vmatprep.subr.bf16.mxu0 0
    %1154 = vmatpush2.bf16.msra.mxu0 0
    %1155 = vmatprep.subr.bf16.mxu0 0
    %1156 = vmatpush2.bf16.msra.mxu0 0
    %1157 = vmatprep.mubr.bf16.mxu0 0
    %1158 = vmatmul.mubr.bf16.gmra.mxu0 %v1076
    %v1159 = vpop.f32.mrf.mxu0
    %v1160 = vadd.f32 0.0, %v1159
    %v1161 = vpop.f32.mrf.mxu0
    %v1162 = vpop.f32.mrf.mxu0
    %v1163 = vpop.f32.mrf.mxu0
    %1164 = vdwg.mxu0
    %v1165 = vadd.f32 %v1044, %v1160
    %v1166 = vlaneseq
    %v1167 = vshrl.u32 %v1166, 7
    %v1168 = vsub.s32 4, %v1167
    %v1169 = vrot.slane %v119, %v1168
    %v1170 = vadd.f32 %v1165, %v1169
    %1171 = vadd.xlane.f32.xlu0 %v1170
    %v1172 = vpop.xlane.xlu0 %1171
    %v1173 = vmul.f32 %v1170, %v1170
    %1174 = vadd.xlane.f32.xlu0 %v1173
    %v1175 = vpop.xlane.xlu0 %1174
    %v1176 = vmul.f32 %v1172, 0.0078125
    %v1177 = vmul.f32 %v1175, 0.0078125
    %v1178 = vmul.f32 %v1176, %v1176
    %v1179 = vsub.f32 %v1177, %v1178
    %v1180 = vmax.f32 %v1179, 0.0
    %v1181 = vsub.f32 %v1170, %v1176
    %v1182 = vadd.f32 %v1180, 1e-05
    %v1183 = vrsqrt.pop %v1182
    %v1184 = vmul.f32 %v1181, %v1183
    %s1185 = scalar_lea.vmem [#allocation8], 256
    %v1186 = vld [vmem:[%s1185] sm:$0xff]
    %v1187 = vld [vmem:[%s1185 + $0x8] sm:$0xff]
    %v1188 = vld [vmem:[%s1185 + $0x10] sm:$0xff]
    %v1189 = vld [vmem:[%s1185 + $0x18] sm:$0xff]
    %v1190 = vld [vmem:[%s1185 + $0x20] sm:$0xff]
    %v1191 = vld [vmem:[%s1185 + $0x28] sm:$0xff]
    %v1192 = vld [vmem:[%s1185 + $0x30] sm:$0xff]
    %v1193 = vld [vmem:[%s1185 + $0x38] sm:$0xff]
    %v1194 = vld [vmem:[%s1185 + $0x40] sm:$0xff]
    %v1195 = vld [vmem:[%s1185 + $0x48] sm:$0xff]
    %v1196 = vld [vmem:[%s1185 + $0x50] sm:$0xff]
    %v1197 = vld [vmem:[%s1185 + $0x58] sm:$0xff]
    %v1198 = vld [vmem:[%s1185 + $0x60] sm:$0xff]
    %v1199 = vld [vmem:[%s1185 + $0x68] sm:$0xff]
    %v1200 = vld [vmem:[%s1185 + $0x70] sm:$0xff]
    %v1201 = vld [vmem:[%s1185 + $0x78] sm:$0xff]
    %v1202 = vld [vmem:[%s1185 + $0x80] sm:$0xff]
    %v1203 = vld [vmem:[%s1185 + $0x88] sm:$0xff]
    %v1204 = vld [vmem:[%s1185 + $0x90] sm:$0xff]
    %v1205 = vld [vmem:[%s1185 + $0x98] sm:$0xff]
    %v1206 = vld [vmem:[%s1185 + $0xa0] sm:$0xff]
    %v1207 = vld [vmem:[%s1185 + $0xa8] sm:$0xff]
    %v1208 = vld [vmem:[%s1185 + $0xb0] sm:$0xff]
    %v1209 = vld [vmem:[%s1185 + $0xb8] sm:$0xff]
    %v1210 = vld [vmem:[%s1185 + $0xc0] sm:$0xff]
    %v1211 = vld [vmem:[%s1185 + $0xc8] sm:$0xff]
    %v1212 = vld [vmem:[%s1185 + $0xd0] sm:$0xff]
    %v1213 = vld [vmem:[%s1185 + $0xd8] sm:$0xff]
    %v1214 = vld [vmem:[%s1185 + $0xe0] sm:$0xff]
    %v1215 = vld [vmem:[%s1185 + $0xe8] sm:$0xff]
    %v1216 = vld [vmem:[%s1185 + $0xf0] sm:$0xff]
    %v1217 = vld [vmem:[%s1185 + $0xf8] sm:$0xff]
    %v1218 = vpack.c.bf16 %v1184, %v1184
    %v1219 = vlaneseq
    %v1220 = vshrl.u32 %v1219, 7
    %v1221 = vsub.s32 5, %v1220
    %v1222 = vrot.slane %v119, %v1221
    %v1223 = vlaneseq
    %v1224 = vshrl.u32 %v1223, 7
    %v1225 = vsub.s32 5, %v1224
    %v1226 = vrot.slane %v120, %v1225
    %v1227 = vlaneseq
    %v1228 = vshrl.u32 %v1227, 7
    %v1229 = vsub.s32 5, %v1228
    %v1230 = vrot.slane %v121, %v1229
    %v1231 = vlaneseq
    %v1232 = vshrl.u32 %v1231, 7
    %v1233 = vsub.s32 5, %v1232
    %v1234 = vrot.slane %v122, %v1233
    %v1267 = vunpack.c.l.b16 %v1186
    %v1268 = vunpack.c.h.b16 %v1186
    %v1269 = vunpack.c.l.b16 %v1187
    %v1270 = vunpack.c.h.b16 %v1187
    %v1271 = vunpack.c.l.b16 %v1188
    %v1272 = vunpack.c.h.b16 %v1188
    %v1273 = vunpack.c.l.b16 %v1189
    %v1274 = vunpack.c.h.b16 %v1189
    %v1275 = vunpack.c.l.b16 %v1190
    %v1276 = vunpack.c.h.b16 %v1190
    %v1277 = vunpack.c.l.b16 %v1191
    %v1278 = vunpack.c.h.b16 %v1191
    %v1279 = vunpack.c.l.b16 %v1192
    %v1280 = vunpack.c.h.b16 %v1192
    %v1281 = vunpack.c.l.b16 %v1193
    %v1282 = vunpack.c.h.b16 %v1193
    %v1283 = vunpack.c.l.b16 %v1194
    %v1284 = vunpack.c.h.b16 %v1194
    %v1285 = vunpack.c.l.b16 %v1195
    %v1286 = vunpack.c.h.b16 %v1195
    %v1287 = vunpack.c.l.b16 %v1196
    %v1288 = vunpack.c.h.b16 %v1196
    %v1289 = vunpack.c.l.b16 %v1197
    %v1290 = vunpack.c.h.b16 %v1197
    %v1291 = vunpack.c.l.b16 %v1198
    %v1292 = vunpack.c.h.b16 %v1198
    %v1293 = vunpack.c.l.b16 %v1199
    %v1294 = vunpack.c.h.b16 %v1199
    %v1295 = vunpack.c.l.b16 %v1200
    %v1296 = vunpack.c.h.b16 %v1200
    %v1297 = vunpack.c.l.b16 %v1201
    %v1298 = vunpack.c.h.b16 %v1201
    %v1299 = vunpack.c.l.b16 %v1202
    %v1300 = vunpack.c.h.b16 %v1202
    %v1301 = vunpack.c.l.b16 %v1203
    %v1302 = vunpack.c.h.b16 %v1203
    %v1303 = vunpack.c.l.b16 %v1204
    %v1304 = vunpack.c.h.b16 %v1204
    %v1305 = vunpack.c.l.b16 %v1205
    %v1306 = vunpack.c.h.b16 %v1205
    %v1307 = vunpack.c.l.b16 %v1206
    %v1308 = vunpack.c.h.b16 %v1206
    %v1309 = vunpack.c.l.b16 %v1207
    %v1310 = vunpack.c.h.b16 %v1207
    %v1311 = vunpack.c.l.b16 %v1208
    %v1312 = vunpack.c.h.b16 %v1208
    %v1313 = vunpack.c.l.b16 %v1209
    %v1314 = vunpack.c.h.b16 %v1209
    %v1315 = vunpack.c.l.b16 %v1210
    %v1316 = vunpack.c.h.b16 %v1210
    %v1317 = vunpack.c.l.b16 %v1211
    %v1318 = vunpack.c.h.b16 %v1211
    %v1319 = vunpack.c.l.b16 %v1212
    %v1320 = vunpack.c.h.b16 %v1212
    %v1321 = vunpack.c.l.b16 %v1213
    %v1322 = vunpack.c.h.b16 %v1213
    %v1323 = vunpack.c.l.b16 %v1214
    %v1324 = vunpack.c.h.b16 %v1214
    %v1325 = vunpack.c.l.b16 %v1215
    %v1326 = vunpack.c.h.b16 %v1215
    %v1327 = vunpack.c.l.b16 %v1216
    %v1328 = vunpack.c.h.b16 %v1216
    %v1329 = vunpack.c.l.b16 %v1217
    %v1330 = vunpack.c.h.b16 %v1217
    %v1331 = vpack.c.b16 %v1271, %v1267
    %v1332 = vpack.c.b16 %v1272, %v1268
    %v1333 = vpack.c.b16 %v1273, %v1269
    %v1334 = vpack.c.b16 %v1274, %v1270
    %v1335 = vpack.c.b16 %v1279, %v1275
    %v1336 = vpack.c.b16 %v1280, %v1276
    %v1337 = vpack.c.b16 %v1281, %v1277
    %v1338 = vpack.c.b16 %v1282, %v1278
    %v1339 = vpack.c.b16 %v1287, %v1283
    %v1340 = vpack.c.b16 %v1288, %v1284
    %v1341 = vpack.c.b16 %v1289, %v1285
    %v1342 = vpack.c.b16 %v1290, %v1286
    %v1343 = vpack.c.b16 %v1295, %v1291
    %v1344 = vpack.c.b16 %v1296, %v1292
    %v1345 = vpack.c.b16 %v1297, %v1293
    %v1346 = vpack.c.b16 %v1298, %v1294
    %v1347 = vpack.c.b16 %v1303, %v1299
    %v1348 = vpack.c.b16 %v1304, %v1300
    %v1349 = vpack.c.b16 %v1305, %v1301
    %v1350 = vpack.c.b16 %v1306, %v1302
    %v1351 = vpack.c.b16 %v1311, %v1307
    %v1352 = vpack.c.b16 %v1312, %v1308
    %v1353 = vpack.c.b16 %v1313, %v1309
    %v1354 = vpack.c.b16 %v1314, %v1310
    %v1355 = vpack.c.b16 %v1319, %v1315
    %v1356 = vpack.c.b16 %v1320, %v1316
    %v1357 = vpack.c.b16 %v1321, %v1317
    %v1358 = vpack.c.b16 %v1322, %v1318
    %v1359 = vpack.c.b16 %v1327, %v1323
    %v1360 = vpack.c.b16 %v1328, %v1324
    %v1361 = vpack.c.b16 %v1329, %v1325
    %v1362 = vpack.c.b16 %v1330, %v1326
    %1395 = vmatprep.subr.bf16.mxu0 %v1360
    %1396 = vmatpush1.bf16.msra.mxu0 %v1359
    %1397 = vmatprep.subr.bf16.mxu0 %v1356
    %1398 = vmatpush1.bf16.msra.mxu0 %v1355
    %1399 = vmatprep.subr.bf16.mxu0 %v1352
    %1400 = vmatpush1.bf16.msra.mxu0 %v1351
    %1401 = vmatprep.subr.bf16.mxu0 %v1348
    %1402 = vmatpush1.bf16.msra.mxu0 %v1347
    %1403 = vmatprep.subr.bf16.mxu0 %v1344
    %1404 = vmatpush1.bf16.msra.mxu0 %v1343
    %1405 = vmatprep.subr.bf16.mxu0 %v1340
    %1406 = vmatpush1.bf16.msra.mxu0 %v1339
    %1407 = vmatprep.subr.bf16.mxu0 %v1336
    %1408 = vmatpush1.bf16.msra.mxu0 %v1335
    %1409 = vmatprep.subr.bf16.mxu0 %v1332
    %1410 = vmatpush1.bf16.msra.mxu0 %v1331
    %1411 = vmatprep.subr.bf16.mxu0 0
    %1412 = vmatpush2.bf16.msra.mxu0 0
    %1413 = vmatprep.subr.bf16.mxu0 0
    %1414 = vmatpush2.bf16.msra.mxu0 0
    %1415 = vmatprep.subr.bf16.mxu0 0
    %1416 = vmatpush2.bf16.msra.mxu0 0
    %1417 = vmatprep.subr.bf16.mxu0 0
    %1418 = vmatpush2.bf16.msra.mxu0 0
    %1419 = vmatprep.subr.bf16.mxu0 0
    %1420 = vmatpush2.bf16.msra.mxu0 0
    %1421 = vmatprep.subr.bf16.mxu0 0
    %1422 = vmatpush2.bf16.msra.mxu0 0
    %1423 = vmatprep.subr.bf16.mxu0 0
    %1424 = vmatpush2.bf16.msra.mxu0 0
    %1425 = vmatprep.subr.bf16.mxu0 0
    %1426 = vmatpush2.bf16.msra.mxu0 0
    %1427 = vmatprep.mubr.bf16.mxu0 0
    %1428 = vmatmul.mubr.bf16.gmra.mxu0 %v1218
    %v1429 = vpop.f32.mrf.mxu0
    %v1430 = vadd.f32 %v1222, %v1429
    %v1431 = vpop.f32.mrf.mxu0
    %v1432 = vadd.f32 %v1226, %v1431
    %v1433 = vpop.f32.mrf.mxu0
    %v1434 = vpop.f32.mrf.mxu0
    %1435 = vdwg.mxu0
    %1436 = vmatprep.subr.bf16.mxu0 %v1362
    %1437 = vmatpush1.bf16.msra.mxu0 %v1361
    %1438 = vmatprep.subr.bf16.mxu0 %v1358
    %1439 = vmatpush1.bf16.msra.mxu0 %v1357
    %1440 = vmatprep.subr.bf16.mxu0 %v1354
    %1441 = vmatpush1.bf16.msra.mxu0 %v1353
    %1442 = vmatprep.subr.bf16.mxu0 %v1350
    %1443 = vmatpush1.bf16.msra.mxu0 %v1349
    %1444 = vmatprep.subr.bf16.mxu0 %v1346
    %1445 = vmatpush1.bf16.msra.mxu0 %v1345
    %1446 = vmatprep.subr.bf16.mxu0 %v1342
    %1447 = vmatpush1.bf16.msra.mxu0 %v1341
    %1448 = vmatprep.subr.bf16.mxu0 %v1338
    %1449 = vmatpush1.bf16.msra.mxu0 %v1337
    %1450 = vmatprep.subr.bf16.mxu0 %v1334
    %1451 = vmatpush1.bf16.msra.mxu0 %v1333
    %1452 = vmatprep.subr.bf16.mxu0 0
    %1453 = vmatpush2.bf16.msra.mxu0 0
    %1454 = vmatprep.subr.bf16.mxu0 0
    %1455 = vmatpush2.bf16.msra.mxu0 0
    %1456 = vmatprep.subr.bf16.mxu0 0
    %1457 = vmatpush2.bf16.msra.mxu0 0
    %1458 = vmatprep.subr.bf16.mxu0 0
    %1459 = vmatpush2.bf16.msra.mxu0 0
    %1460 = vmatprep.subr.bf16.mxu0 0
    %1461 = vmatpush2.bf16.msra.mxu0 0
    %1462 = vmatprep.subr.bf16.mxu0 0
    %1463 = vmatpush2.bf16.msra.mxu0 0
    %1464 = vmatprep.subr.bf16.mxu0 0
    %1465 = vmatpush2.bf16.msra.mxu0 0
    %1466 = vmatprep.subr.bf16.mxu0 0
    %1467 = vmatpush2.bf16.msra.mxu0 0
    %1468 = vmatprep.mubr.bf16.mxu0 0
    %1469 = vmatmul.mubr.bf16.gmra.mxu0 %v1218
    %v1470 = vpop.f32.mrf.mxu0
    %v1471 = vadd.f32 %v1230, %v1470
    %v1472 = vpop.f32.mrf.mxu0
    %v1473 = vadd.f32 %v1234, %v1472
    %v1474 = vpop.f32.mrf.mxu0
    %v1475 = vpop.f32.mrf.mxu0
    %1476 = vdwg.mxu0
    %v1477 = vmul.f32 %v1430, 0.5
    %v1478 = vmul.f32 %v1432, 0.5
    %v1479 = vmul.f32 %v1471, 0.5
    %v1480 = vmul.f32 %v1473, 0.5
    %v1481 = vmul.f32 %v1430, %v1430
    %v1482 = vmul.f32 %v1432, %v1432
    %v1483 = vmul.f32 %v1471, %v1471
    %v1484 = vmul.f32 %v1473, %v1473
    %v1485 = vmul.f32 %v1430, %v1481
    %v1486 = vmul.f32 %v1432, %v1482
    %v1487 = vmul.f32 %v1471, %v1483
    %v1488 = vmul.f32 %v1473, %v1484
    %v1489 = vmul.f32 %v1485, 0.044715
    %v1490 = vmul.f32 %v1486, 0.044715
    %v1491 = vmul.f32 %v1487, 0.044715
    %v1492 = vmul.f32 %v1488, 0.044715
    %v1493 = vadd.f32 %v1430, %v1489
    %v1494 = vadd.f32 %v1432, %v1490
    %v1495 = vadd.f32 %v1471, %v1491
    %v1496 = vadd.f32 %v1473, %v1492
    %v1497 = vmul.f32 %v1493, 0.7978845
    %v1498 = vmul.f32 %v1494, 0.7978845
    %v1499 = vmul.f32 %v1495, 0.7978845
    %v1500 = vmul.f32 %v1496, 0.7978845
    %v1501 = vtanh.pop %v1497
    %v1502 = vtanh.pop %v1498
    %v1503 = vtanh.pop %v1499
    %v1504 = vtanh.pop %v1500
    %v1505 = vadd.f32 %v1501, 1.0
    %v1506 = vadd.f32 %v1502, 1.0
    %v1507 = vadd.f32 %v1503, 1.0
    %v1508 = vadd.f32 %v1504, 1.0
    %v1509 = vmul.f32 %v1477, %v1505
    %v1510 = vmul.f32 %v1478, %v1506
    %v1511 = vmul.f32 %v1479, %v1507
    %v1512 = vmul.f32 %v1480, %v1508
    %s1513 = scalar_lea.vmem [#allocation10], 256
    %v1514 = vld [vmem:[%s1513] sm:$0xf]
    %v1515 = vld [vmem:[%s1513 + $0x4] sm:$0xf]
    %v1516 = vld [vmem:[%s1513 + $0x8] sm:$0xf]
    %v1517 = vld [vmem:[%s1513 + $0xc] sm:$0xf]
    %v1518 = vld [vmem:[%s1513 + $0x10] sm:$0xf]
    %v1519 = vld [vmem:[%s1513 + $0x14] sm:$0xf]
    %v1520 = vld [vmem:[%s1513 + $0x18] sm:$0xf]
    %v1521 = vld [vmem:[%s1513 + $0x1c] sm:$0xf]
    %v1522 = vld [vmem:[%s1513 + $0x20] sm:$0xf]
    %v1523 = vld [vmem:[%s1513 + $0x24] sm:$0xf]
    %v1524 = vld [vmem:[%s1513 + $0x28] sm:$0xf]
    %v1525 = vld [vmem:[%s1513 + $0x2c] sm:$0xf]
    %v1526 = vld [vmem:[%s1513 + $0x30] sm:$0xf]
    %v1527 = vld [vmem:[%s1513 + $0x34] sm:$0xf]
    %v1528 = vld [vmem:[%s1513 + $0x38] sm:$0xf]
    %v1529 = vld [vmem:[%s1513 + $0x3c] sm:$0xf]
    %v1530 = vld [vmem:[%s1513 + $0x40] sm:$0xf]
    %v1531 = vld [vmem:[%s1513 + $0x44] sm:$0xf]
    %v1532 = vld [vmem:[%s1513 + $0x48] sm:$0xf]
    %v1533 = vld [vmem:[%s1513 + $0x4c] sm:$0xf]
    %v1534 = vld [vmem:[%s1513 + $0x50] sm:$0xf]
    %v1535 = vld [vmem:[%s1513 + $0x54] sm:$0xf]
    %v1536 = vld [vmem:[%s1513 + $0x58] sm:$0xf]
    %v1537 = vld [vmem:[%s1513 + $0x5c] sm:$0xf]
    %v1538 = vld [vmem:[%s1513 + $0x60] sm:$0xf]
    %v1539 = vld [vmem:[%s1513 + $0x64] sm:$0xf]
    %v1540 = vld [vmem:[%s1513 + $0x68] sm:$0xf]
    %v1541 = vld [vmem:[%s1513 + $0x6c] sm:$0xf]
    %v1542 = vld [vmem:[%s1513 + $0x70] sm:$0xf]
    %v1543 = vld [vmem:[%s1513 + $0x74] sm:$0xf]
    %v1544 = vld [vmem:[%s1513 + $0x78] sm:$0xf]
    %v1545 = vld [vmem:[%s1513 + $0x7c] sm:$0xf]
    %v1546 = vld [vmem:[%s1513 + $0x80] sm:$0xf]
    %v1547 = vld [vmem:[%s1513 + $0x84] sm:$0xf]
    %v1548 = vld [vmem:[%s1513 + $0x88] sm:$0xf]
    %v1549 = vld [vmem:[%s1513 + $0x8c] sm:$0xf]
    %v1550 = vld [vmem:[%s1513 + $0x90] sm:$0xf]
    %v1551 = vld [vmem:[%s1513 + $0x94] sm:$0xf]
    %v1552 = vld [vmem:[%s1513 + $0x98] sm:$0xf]
    %v1553 = vld [vmem:[%s1513 + $0x9c] sm:$0xf]
    %v1554 = vld [vmem:[%s1513 + $0xa0] sm:$0xf]
    %v1555 = vld [vmem:[%s1513 + $0xa4] sm:$0xf]
    %v1556 = vld [vmem:[%s1513 + $0xa8] sm:$0xf]
    %v1557 = vld [vmem:[%s1513 + $0xac] sm:$0xf]
    %v1558 = vld [vmem:[%s1513 + $0xb0] sm:$0xf]
    %v1559 = vld [vmem:[%s1513 + $0xb4] sm:$0xf]
    %v1560 = vld [vmem:[%s1513 + $0xb8] sm:$0xf]
    %v1561 = vld [vmem:[%s1513 + $0xbc] sm:$0xf]
    %v1562 = vld [vmem:[%s1513 + $0xc0] sm:$0xf]
    %v1563 = vld [vmem:[%s1513 + $0xc4] sm:$0xf]
    %v1564 = vld [vmem:[%s1513 + $0xc8] sm:$0xf]
    %v1565 = vld [vmem:[%s1513 + $0xcc] sm:$0xf]
    %v1566 = vld [vmem:[%s1513 + $0xd0] sm:$0xf]
    %v1567 = vld [vmem:[%s1513 + $0xd4] sm:$0xf]
    %v1568 = vld [vmem:[%s1513 + $0xd8] sm:$0xf]
    %v1569 = vld [vmem:[%s1513 + $0xdc] sm:$0xf]
    %v1570 = vld [vmem:[%s1513 + $0xe0] sm:$0xf]
    %v1571 = vld [vmem:[%s1513 + $0xe4] sm:$0xf]
    %v1572 = vld [vmem:[%s1513 + $0xe8] sm:$0xf]
    %v1573 = vld [vmem:[%s1513 + $0xec] sm:$0xf]
    %v1574 = vld [vmem:[%s1513 + $0xf0] sm:$0xf]
    %v1575 = vld [vmem:[%s1513 + $0xf4] sm:$0xf]
    %v1576 = vld [vmem:[%s1513 + $0xf8] sm:$0xf]
    %v1577 = vld [vmem:[%s1513 + $0xfc] sm:$0xf]
    %v1578 = vpack.c.bf16 %v1509, %v1509
    %v1579 = vpack.c.bf16 %v1510, %v1510
    %v1580 = vpack.c.bf16 %v1511, %v1511
    %v1581 = vpack.c.bf16 %v1512, %v1512
    %v1646 = vunpack.c.l.b16 %v1514
    %v1647 = vunpack.c.l.b16 %v1515
    %v1648 = vunpack.c.l.b16 %v1516
    %v1649 = vunpack.c.l.b16 %v1517
    %v1650 = vunpack.c.l.b16 %v1518
    %v1651 = vunpack.c.l.b16 %v1519
    %v1652 = vunpack.c.l.b16 %v1520
    %v1653 = vunpack.c.l.b16 %v1521
    %v1654 = vunpack.c.l.b16 %v1522
    %v1655 = vunpack.c.l.b16 %v1523
    %v1656 = vunpack.c.l.b16 %v1524
    %v1657 = vunpack.c.l.b16 %v1525
    %v1658 = vunpack.c.l.b16 %v1526
    %v1659 = vunpack.c.l.b16 %v1527
    %v1660 = vunpack.c.l.b16 %v1528
    %v1661 = vunpack.c.l.b16 %v1529
    %v1662 = vunpack.c.l.b16 %v1530
    %v1663 = vunpack.c.l.b16 %v1531
    %v1664 = vunpack.c.l.b16 %v1532
    %v1665 = vunpack.c.l.b16 %v1533
    %v1666 = vunpack.c.l.b16 %v1534
    %v1667 = vunpack.c.l.b16 %v1535
    %v1668 = vunpack.c.l.b16 %v1536
    %v1669 = vunpack.c.l.b16 %v1537
    %v1670 = vunpack.c.l.b16 %v1538
    %v1671 = vunpack.c.l.b16 %v1539
    %v1672 = vunpack.c.l.b16 %v1540
    %v1673 = vunpack.c.l.b16 %v1541
    %v1674 = vunpack.c.l.b16 %v1542
    %v1675 = vunpack.c.l.b16 %v1543
    %v1676 = vunpack.c.l.b16 %v1544
    %v1677 = vunpack.c.l.b16 %v1545
    %v1678 = vunpack.c.l.b16 %v1546
    %v1679 = vunpack.c.l.b16 %v1547
    %v1680 = vunpack.c.l.b16 %v1548
    %v1681 = vunpack.c.l.b16 %v1549
    %v1682 = vunpack.c.l.b16 %v1550
    %v1683 = vunpack.c.l.b16 %v1551
    %v1684 = vunpack.c.l.b16 %v1552
    %v1685 = vunpack.c.l.b16 %v1553
    %v1686 = vunpack.c.l.b16 %v1554
    %v1687 = vunpack.c.l.b16 %v1555
    %v1688 = vunpack.c.l.b16 %v1556
    %v1689 = vunpack.c.l.b16 %v1557
    %v1690 = vunpack.c.l.b16 %v1558
    %v1691 = vunpack.c.l.b16 %v1559
    %v1692 = vunpack.c.l.b16 %v1560
    %v1693 = vunpack.c.l.b16 %v1561
    %v1694 = vunpack.c.l.b16 %v1562
    %v1695 = vunpack.c.l.b16 %v1563
    %v1696 = vunpack.c.l.b16 %v1564
    %v1697 = vunpack.c.l.b16 %v1565
    %v1698 = vunpack.c.l.b16 %v1566
    %v1699 = vunpack.c.l.b16 %v1567
    %v1700 = vunpack.c.l.b16 %v1568
    %v1701 = vunpack.c.l.b16 %v1569
    %v1702 = vunpack.c.l.b16 %v1570
    %v1703 = vunpack.c.l.b16 %v1571
    %v1704 = vunpack.c.l.b16 %v1572
    %v1705 = vunpack.c.l.b16 %v1573
    %v1706 = vunpack.c.l.b16 %v1574
    %v1707 = vunpack.c.l.b16 %v1575
    %v1708 = vunpack.c.l.b16 %v1576
    %v1709 = vunpack.c.l.b16 %v1577
    %v1710 = vpack.c.b16 %v1647, %v1646
    %v1711 = vpack.c.b16 %v1649, %v1648
    %v1712 = vpack.c.b16 %v1651, %v1650
    %v1713 = vpack.c.b16 %v1653, %v1652
    %v1714 = vpack.c.b16 %v1655, %v1654
    %v1715 = vpack.c.b16 %v1657, %v1656
    %v1716 = vpack.c.b16 %v1659, %v1658
    %v1717 = vpack.c.b16 %v1661, %v1660
    %v1718 = vpack.c.b16 %v1663, %v1662
    %v1719 = vpack.c.b16 %v1665, %v1664
    %v1720 = vpack.c.b16 %v1667, %v1666
    %v1721 = vpack.c.b16 %v1669, %v1668
    %v1722 = vpack.c.b16 %v1671, %v1670
    %v1723 = vpack.c.b16 %v1673, %v1672
    %v1724 = vpack.c.b16 %v1675, %v1674
    %v1725 = vpack.c.b16 %v1677, %v1676
    %v1726 = vpack.c.b16 %v1679, %v1678
    %v1727 = vpack.c.b16 %v1681, %v1680
    %v1728 = vpack.c.b16 %v1683, %v1682
    %v1729 = vpack.c.b16 %v1685, %v1684
    %v1730 = vpack.c.b16 %v1687, %v1686
    %v1731 = vpack.c.b16 %v1689, %v1688
    %v1732 = vpack.c.b16 %v1691, %v1690
    %v1733 = vpack.c.b16 %v1693, %v1692
    %v1734 = vpack.c.b16 %v1695, %v1694
    %v1735 = vpack.c.b16 %v1697, %v1696
    %v1736 = vpack.c.b16 %v1699, %v1698
    %v1737 = vpack.c.b16 %v1701, %v1700
    %v1738 = vpack.c.b16 %v1703, %v1702
    %v1739 = vpack.c.b16 %v1705, %v1704
    %v1740 = vpack.c.b16 %v1707, %v1706
    %v1741 = vpack.c.b16 %v1709, %v1708
    %1774 = vmatprep.subr.bf16.mxu0 0
    %1775 = vmatpush1.bf16.msra.mxu0 %v1717
    %1776 = vmatprep.subr.bf16.mxu0 0
    %1777 = vmatpush1.bf16.msra.mxu0 %v1716
    %1778 = vmatprep.subr.bf16.mxu0 0
    %1779 = vmatpush1.bf16.msra.mxu0 %v1715
    %1780 = vmatprep.subr.bf16.mxu0 0
    %1781 = vmatpush1.bf16.msra.mxu0 %v1714
    %1782 = vmatprep.subr.bf16.mxu0 0
    %1783 = vmatpush1.bf16.msra.mxu0 %v1713
    %1784 = vmatprep.subr.bf16.mxu0 0
    %1785 = vmatpush1.bf16.msra.mxu0 %v1712
    %1786 = vmatprep.subr.bf16.mxu0 0
    %1787 = vmatpush1.bf16.msra.mxu0 %v1711
    %1788 = vmatprep.subr.bf16.mxu0 0
    %1789 = vmatpush1.bf16.msra.mxu0 %v1710
    %1790 = vmatprep.subr.bf16.mxu0 0
    %1791 = vmatpush2.bf16.msra.mxu0 %v1725
    %1792 = vmatprep.subr.bf16.mxu0 0
    %1793 = vmatpush2.bf16.msra.mxu0 %v1724
    %1794 = vmatprep.subr.bf16.mxu0 0
    %1795 = vmatpush2.bf16.msra.mxu0 %v1723
    %1796 = vmatprep.subr.bf16.mxu0 0
    %1797 = vmatpush2.bf16.msra.mxu0 %v1722
    %1798 = vmatprep.subr.bf16.mxu0 0
    %1799 = vmatpush2.bf16.msra.mxu0 %v1721
    %1800 = vmatprep.subr.bf16.mxu0 0
    %1801 = vmatpush2.bf16.msra.mxu0 %v1720
    %1802 = vmatprep.subr.bf16.mxu0 0
    %1803 = vmatpush2.bf16.msra.mxu0 %v1719
    %1804 = vmatprep.subr.bf16.mxu0 0
    %1805 = vmatpush2.bf16.msra.mxu0 %v1718
    %1806 = vmatprep.mubr.bf16.mxu0 %v1579
    %1807 = vmatmul.mubr.bf16.gmra.mxu0 %v1578
    %v1808 = vpop.f32.mrf.mxu0
    %v1809 = vadd.f32 0.0, %v1808
    %v1810 = vpop.f32.mrf.mxu0
    %v1811 = vpop.f32.mrf.mxu0
    %v1812 = vpop.f32.mrf.mxu0
    %1813 = vdwg.mxu0
    %1814 = vmatprep.subr.bf16.mxu0 0
    %1815 = vmatpush1.bf16.msra.mxu0 %v1733
    %1816 = vmatprep.subr.bf16.mxu0 0
    %1817 = vmatpush1.bf16.msra.mxu0 %v1732
    %1818 = vmatprep.subr.bf16.mxu0 0
    %1819 = vmatpush1.bf16.msra.mxu0 %v1731
    %1820 = vmatprep.subr.bf16.mxu0 0
    %1821 = vmatpush1.bf16.msra.mxu0 %v1730
    %1822 = vmatprep.subr.bf16.mxu0 0
    %1823 = vmatpush1.bf16.msra.mxu0 %v1729
    %1824 = vmatprep.subr.bf16.mxu0 0
    %1825 = vmatpush1.bf16.msra.mxu0 %v1728
    %1826 = vmatprep.subr.bf16.mxu0 0
    %1827 = vmatpush1.bf16.msra.mxu0 %v1727
    %1828 = vmatprep.subr.bf16.mxu0 0
    %1829 = vmatpush1.bf16.msra.mxu0 %v1726
    %1830 = vmatprep.subr.bf16.mxu0 0
    %1831 = vmatpush2.bf16.msra.mxu0 %v1741
    %1832 = vmatprep.subr.bf16.mxu0 0
    %1833 = vmatpush2.bf16.msra.mxu0 %v1740
    %1834 = vmatprep.subr.bf16.mxu0 0
    %1835 = vmatpush2.bf16.msra.mxu0 %v1739
    %1836 = vmatprep.subr.bf16.mxu0 0
    %1837 = vmatpush2.bf16.msra.mxu0 %v1738
    %1838 = vmatprep.subr.bf16.mxu0 0
    %1839 = vmatpush2.bf16.msra.mxu0 %v1737
    %1840 = vmatprep.subr.bf16.mxu0 0
    %1841 = vmatpush2.bf16.msra.mxu0 %v1736
    %1842 = vmatprep.subr.bf16.mxu0 0
    %1843 = vmatpush2.bf16.msra.mxu0 %v1735
    %1844 = vmatprep.subr.bf16.mxu0 0
    %1845 = vmatpush2.bf16.msra.mxu0 %v1734
    %1846 = vmatprep.mubr.bf16.mxu0 %v1581
    %1847 = vmatmul.mubr.bf16.gmra.mxu0 %v1580
    %v1848 = vpop.f32.mrf.mxu0
    %v1849 = vadd.f32 %v1809, %v1848
    %v1850 = vpop.f32.mrf.mxu0
    %v1851 = vpop.f32.mrf.mxu0
    %v1852 = vpop.f32.mrf.mxu0
    %1853 = vdwg.mxu0
    %v1854 = vadd.f32 %v1170, %v1849
    %v1855 = vlaneseq
    %v1856 = vshrl.u32 %v1855, 7
    %v1857 = vsub.s32 6, %v1856
    %v1858 = vrot.slane %v119, %v1857
    %v1859 = vadd.f32 %v1854, %v1858
    %1860 = vadd.xlane.f32.xlu0 %v1859
    %v1861 = vpop.xlane.xlu0 %1860
    %v1862 = vmul.f32 %v1859, %v1859
    %1863 = vadd.xlane.f32.xlu0 %v1862
    %v1864 = vpop.xlane.xlu0 %1863
    %v1865 = vmul.f32 %v1861, 0.0078125
    %v1866 = vmul.f32 %v1864, 0.0078125
    %v1867 = vmul.f32 %v1865, %v1865
    %v1868 = vsub.f32 %v1866, %v1867
    %v1869 = vmax.f32 %v1868, 0.0
    %v1870 = vsub.f32 %v1859, %v1865
    %v1871 = vadd.f32 %v1869, 1e-05
    %v1872 = vrsqrt.pop %v1871
    %v1873 = vmul.f32 %v1870, %v1872
    %v1874 = vld [vmem:[#allocation11] sm:$0xf]
    %v1875 = vld [vmem:[#allocation11 + $0x4] sm:$0xf]
    %v1876 = vld [vmem:[#allocation11 + $0x8] sm:$0xf]
    %v1877 = vld [vmem:[#allocation11 + $0xc] sm:$0xf]
    %v1878 = vld [vmem:[#allocation11 + $0x10] sm:$0xf]
    %v1879 = vld [vmem:[#allocation11 + $0x14] sm:$0xf]
    %v1880 = vld [vmem:[#allocation11 + $0x18] sm:$0xf]
    %v1881 = vld [vmem:[#allocation11 + $0x1c] sm:$0xf]
    %v1882 = vld [vmem:[#allocation11 + $0x20] sm:$0xf]
    %v1883 = vld [vmem:[#allocation11 + $0x24] sm:$0xf]
    %v1884 = vld [vmem:[#allocation11 + $0x28] sm:$0xf]
    %v1885 = vld [vmem:[#allocation11 + $0x2c] sm:$0xf]
    %v1886 = vld [vmem:[#allocation11 + $0x30] sm:$0xf]
    %v1887 = vld [vmem:[#allocation11 + $0x34] sm:$0xf]
    %v1888 = vld [vmem:[#allocation11 + $0x38] sm:$0xf]
    %v1889 = vld [vmem:[#allocation11 + $0x3c] sm:$0xf]
    %v1890 = vpack.c.bf16 %v1873, %v1873
    %v1891 = vlaneseq
    %v1892 = vshrl.u32 %v1891, 7
    %v1893 = vsub.s32 7, %v1892
    %v1894 = vrot.slane %v119, %v1893
    %v1911 = vunpack.c.l.b16 %v1874
    %v1912 = vunpack.c.l.b16 %v1875
    %v1913 = vunpack.c.l.b16 %v1876
    %v1914 = vunpack.c.l.b16 %v1877
    %v1915 = vunpack.c.l.b16 %v1878
    %v1916 = vunpack.c.l.b16 %v1879
    %v1917 = vunpack.c.l.b16 %v1880
    %v1918 = vunpack.c.l.b16 %v1881
    %v1919 = vunpack.c.l.b16 %v1882
    %v1920 = vunpack.c.l.b16 %v1883
    %v1921 = vunpack.c.l.b16 %v1884
    %v1922 = vunpack.c.l.b16 %v1885
    %v1923 = vunpack.c.l.b16 %v1886
    %v1924 = vunpack.c.l.b16 %v1887
    %v1925 = vunpack.c.l.b16 %v1888
    %v1926 = vunpack.c.l.b16 %v1889
    %v1927 = vpack.c.b16 %v1912, %v1911
    %v1928 = vpack.c.b16 %v1914, %v1913
    %v1929 = vpack.c.b16 %v1916, %v1915
    %v1930 = vpack.c.b16 %v1918, %v1917
    %v1931 = vpack.c.b16 %v1920, %v1919
    %v1932 = vpack.c.b16 %v1922, %v1921
    %v1933 = vpack.c.b16 %v1924, %v1923
    %v1934 = vpack.c.b16 %v1926, %v1925
    %1943 = vmatprep.subr.bf16.mxu0 0
    %1944 = vmatpush1.bf16.msra.mxu0 %v1934
    %1945 = vmatprep.subr.bf16.mxu0 0
    %1946 = vmatpush1.bf16.msra.mxu0 %v1933
    %1947 = vmatprep.subr.bf16.mxu0 0
    %1948 = vmatpush1.bf16.msra.mxu0 %v1932
    %1949 = vmatprep.subr.bf16.mxu0 0
    %1950 = vmatpush1.bf16.msra.mxu0 %v1931
    %1951 = vmatprep.subr.bf16.mxu0 0
    %1952 = vmatpush1.bf16.msra.mxu0 %v1930
    %1953 = vmatprep.subr.bf16.mxu0 0
    %1954 = vmatpush1.bf16.msra.mxu0 %v1929
    %1955 = vmatprep.subr.bf16.mxu0 0
    %1956 = vmatpush1.bf16.msra.mxu0 %v1928
    %1957 = vmatprep.subr.bf16.mxu0 0
    %1958 = vmatpush1.bf16.msra.mxu0 %v1927
    %1959 = vmatprep.subr.bf16.mxu0 0
    %1960 = vmatpush2.bf16.msra.mxu0 0
    %1961 = vmatprep.subr.bf16.mxu0 0
    %1962 = vmatpush2.bf16.msra.mxu0 0
    %1963 = vmatprep.subr.bf16.mxu0 0
    %1964 = vmatpush2.bf16.msra.mxu0 0
    %1965 = vmatprep.subr.bf16.mxu0 0
    %1966 = vmatpush2.bf16.msra.mxu0 0
    %1967 = vmatprep.subr.bf16.mxu0 0
    %1968 = vmatpush2.bf16.msra.mxu0 0
    %1969 = vmatprep.subr.bf16.mxu0 0
    %1970 = vmatpush2.bf16.msra.mxu0 0
    %1971 = vmatprep.subr.bf16.mxu0 0
    %1972 = vmatpush2.bf16.msra.mxu0 0
    %1973 = vmatprep.subr.bf16.mxu0 0
    %1974 = vmatpush2.bf16.msra.mxu0 0
    %1975 = vmatprep.mubr.bf16.mxu0 0
    %1976 = vmatmul.mubr.bf16.gmra.mxu0 %v1890
    %v1977 = vpop.f32.mrf.mxu0
    %v1978 = vadd.f32 %v1894, %v1977
    %v1979 = vpop.f32.mrf.mxu0
    %v1980 = vpop.f32.mrf.mxu0
    %v1981 = vpop.f32.mrf.mxu0
    %1982 = vdwg.mxu0
    %1983 = vst [vmem:[#allocation14] sm:$0xff] %v1978
    // Predicated region
    $region58: #{tpu_custom_call.1} parent=1 // pred_check
      _
    $region59: #{tpu_custom_call.1} parent=1 // pred_check_branch
      %1985 = sbr.rel (0) target = $region61
    $region60: #{tpu_custom_call.1} parent=1 // pred_region
      %s1987 = ssub.s32 128, 128
      %1988 = vsyncadd [#allocation4], %s1987
      %s1990 = sshll.u32 [#allocation14], 4
      %s1991 = int_to_ptr.vmem [resolvable:$true] %s1990
      %1993 = dma.vmem_to_hbm [thread:$0]  %s1991, 128, %s7, [#allocation4]
    $region61: #{tpu_custom_call.1} parent=1 // pred_fallthru
      _
    // Predicated region
    $region62: #{tpu_custom_call.1} parent=1 // pred_check
      _
    $region63: #{tpu_custom_call.1} parent=1 // pred_check_branch
      %1995 = sbr.rel (0) target = $region65
    $region64: #{tpu_custom_call.1} parent=1 // pred_region
      %1996 = dma.done [#allocation4], 128
    $region65: #{tpu_custom_call.1} parent=1 // pred_fallthru
      _
    %1997 = vsyncpa [#allocation3], 1
    %1998 = vsyncpa [#allocation6], 1
    %1999 = vsyncpa [#allocation9], 1
    %2000 = vsyncpa [#allocation12], 1
    %2001 = vsyncpa [#allocation4], 1

</llo_original>
